<compile_context>
chip_gen: v7x
topology: tpu7x:2x2x1
jax: 0.10.0
libtpu: 0.0.40
codegen_flags: <defaults>
</compile_context>

<pallas_src>
import functools

import jax
import jax.numpy as jnp
from jax.experimental import pallas as pl
from jax.experimental.pallas import tpu as pltpu


def _round_up(n: int, m: int) -> int:
    return ((n + m - 1) // m) * m


def _pad2(a, rows: int, cols: int):
    r, c = a.shape
    if r == rows and c == cols:
        return a
    return jnp.pad(a, ((0, rows - r), (0, cols - c)))


def _tpu_kind() -> str:
    try:
        return jax.devices()[0].device_kind.lower()
    except Exception:
        return ""


def _vmem_capacity_bytes() -> int:
    # v7x has 64 MiB VMEM per TensorCore; v5e/v6e have 128 MiB.
    return (64 << 20) if "v7" in _tpu_kind() else (128 << 20)


def _default_bf16() -> bool:
    # bf16-native MXU on v6e/v7x; keep f32 on v5e (no bf16 VPU, kernel is mem-bound).
    kind = _tpu_kind()
    return ("v6" in kind) or ("v7" in kind)


def predictor_kernel(x_ref, w1_ref, b1_ref, w2_ref, b2_ref,
                     wfea_ref, bfea_ref, wcls_ref, bcls_ref,
                     wreg_ref, breg_ref, out_ref,
                     *, fea_pad, cls_slab, bias_lane):
    f32 = jnp.float32

    def mm(lhs, w_ref):
        w = w_ref[...]                                   # weights pre-cast in wrapper
        return jnp.dot(lhs.astype(w.dtype), w, preferred_element_type=f32)

    x = x_ref[...].astype(f32)

    # Trunk: Linear -> ReLU -> Linear -> ReLU            (elementwise kept in f32)
    h = jnp.maximum(mm(x, w1_ref) + b1_ref[...], 0.0)    # (Bt, H_pad)
    h = jnp.maximum(mm(h, w2_ref) + b2_ref[...], 0.0)    # (Bt, F_pad)

    # Fused reg_fea / cls_fea branch projections (same LHS -> single MXU pass).
    t = mm(h, wfea_ref) + bfea_ref[...]                  # (Bt, 2*F_pad)
    fea_reg = h + jnp.maximum(t[:, :fea_pad], 0.0)       # residual + ReLU
    fea_cls = h + t[:, fea_pad:]                         # residual, no ReLU

    # Reg head: one scalar per row -> VPU multiply + lane reduction (XLU), no
    # 128-lane output block / writeback.
    bias_col = jnp.sum(fea_reg * wreg_ref[...], axis=-1, keepdims=True) + breg_ref[...]

    # Cls head; weight lane-padded so N is a multiple of 128, with >=1 spare lane.
    cls_blk = mm(fea_cls, wcls_ref) + bcls_ref[...]      # (Bt, C_slab)
    lane = jax.lax.broadcasted_iota(jnp.int32, cls_blk.shape, 1)
    cls_blk = jnp.where(lane == bias_lane, bias_col, cls_blk)   # merge bias into spare lane

    # Lane-dense slab: [cls|bias (C_slab) | fea_cls (F_pad)] — aligned, unmasked stores.
    out_ref[:, :cls_slab] = cls_blk.astype(out_ref.dtype)
    out_ref[:, cls_slab:] = fea_cls.astype(out_ref.dtype)


def predictor_forward(x, params, *, batch_tile=1024, use_bf16_matmul=None,
                      out_dtype=None):
    """Full Predictor_MLP_REG_CLS forward in one Pallas kernel, tiled over batch.

    Returns (bias_value[B], cls_out[B, pred_cls_num], fea_cls[B, pred_fea_dim]).
    """
    B, input_dim = x.shape
    (w1, b1, w2, b2, wr, br, wc, bc, wreg, breg, cls_v, cls_g, cls_b) = params
    hidden_dim = w1.shape[1]
    fea_dim = w2.shape[1]
    cls_num = cls_v.shape[1]

    if use_bf16_matmul is None:
        use_bf16_matmul = _default_bf16()
    out_dtype = x.dtype if out_dtype is None else out_dtype

    # weight_norm: effective classifier weight g * v / ||v|| (norm over input axis).
    v32 = cls_v.astype(jnp.float32)
    wcls = (cls_g.astype(jnp.float32) * v32
            / jnp.sqrt(jnp.sum(v32 * v32, axis=0, keepdims=True))).astype(cls_v.dtype)

    # Zero-pad every lane dim used in-kernel to a multiple of 128 so all slices /
    # stores are aligned + unmasked and all matmul K dims are lane-dense. Exact.
    H_pad = _round_up(hidden_dim, 128)
    F_pad = _round_up(fea_dim, 128)
    C_slab = _round_up(cls_num + 1, 128)     # +1 guarantees a spare lane for the bias
    bias_lane = C_slab - 1

    w1p, b1p = _pad2(w1, input_dim, H_pad), _pad2(b1, 1, H_pad)
    w2p, b2p = _pad2(w2, H_pad, F_pad), _pad2(b2, 1, F_pad)
    wfea = jnp.concatenate([_pad2(wr, F_pad, F_pad), _pad2(wc, F_pad, F_pad)], axis=1)
    bfea = jnp.concatenate([_pad2(br, 1, F_pad), _pad2(bc, 1, F_pad)], axis=1)
    wclsp, bclsp = _pad2(wcls, F_pad, C_slab), _pad2(cls_b, 1, C_slab)
    wreg_row = _pad2(wreg.T, 1, F_pad).astype(jnp.float32)       # reg head as VPU row
    breg_sc = breg.reshape(1, 1).astype(jnp.float32)

    # Pre-cast MXU weight matrices (not biases / reg row) in the wrapper.
    mxu_dtype = jnp.bfloat16 if use_bf16_matmul else jnp.float32
    w1p, w2p, wfea, wclsp = (w.astype(mxu_dtype) for w in (w1p, w2p, wfea, wclsp))
    b1p, b2p, bfea, bclsp = (b.astype(jnp.float32) for b in (b1p, b2p, bfea, bclsp))

    weights = (w1p, b1p, w2p, b2p, wfea, bfea, wclsp, bclsp, wreg_row, breg_sc)
    weight_bytes = sum(int(w.size) * w.dtype.itemsize for w in weights)

    out_w = C_slab + F_pad                              # lane-dense output slab width
    out_itemsize = jnp.dtype(out_dtype).itemsize
    x_itemsize = x.dtype.itemsize

    def vmem_needed(bt_):
        # Double-buffered x/out blocks + single-buffered resident weights +
        # in-kernel f32 intermediates (h, t, fea_reg, fea_cls, cls_blk) + fudge.
        blocks = 2 * bt_ * (input_dim * x_itemsize + out_w * out_itemsize)
        temps = bt_ * (H_pad + 5 * F_pad + C_slab) * 4
        return blocks + weight_bytes + temps + (2 << 20)

    vmem_cap = (_vmem_capacity_bytes() * 3) // 4        # 48 MiB on v7x, 96 MiB else

    # Batch tiling: large tiles, >=2 grid steps for mid/large batches (v7x megacore),
    # shrink bt (never the VMEM budget) if the budget is exceeded.
    B8 = _round_up(B, 8)
    bt = min(_round_up(batch_tile, 8), B8)
    if B8 > 256:
        bt = min(bt, _round_up((B8 + 1) // 2, 8))
    while vmem_needed(bt) > vmem_cap and bt > 8:
        bt = max(8, _round_up(bt // 2, 8))

    Bp = _round_up(B, bt)
    if Bp != B:
        x = jnp.pad(x, ((0, Bp - B), (0, 0)))
    grid = (Bp // bt,)

    vmem_limit = int(min(max(vmem_needed(bt), 32 << 20), vmem_cap))

    kernel = functools.partial(predictor_kernel, fea_pad=F_pad,
                               cls_slab=C_slab, bias_lane=bias_lane)

    # Advisory cost estimate for the XLA scheduler.
    flops = 2 * Bp * (input_dim * H_pad + H_pad * F_pad + F_pad * 2 * F_pad
                      + F_pad * C_slab + F_pad)
    bytes_accessed = int(Bp * input_dim * x_itemsize + weight_bytes
                         + Bp * out_w * out_itemsize)
    cost = pl.CostEstimate(flops=int(flops), transcendentals=0,
                           bytes_accessed=bytes_accessed)

    def weight_spec(arr, single_buffer):
        nd = arr.ndim
        idx = lambda i, _nd=nd: (0,) * _nd
        if single_buffer:
            try:
                # Grid-invariant index_map -> single-buffer to reclaim VMEM.
                return pl.BlockSpec(arr.shape, idx, pipeline_mode=pl.Buffered(1))
            except TypeError:
                pass
        return pl.BlockSpec(arr.shape, idx)

    def build(single_buffer_weights):
        return pl.pallas_call(
            kernel,
            out_shape=jax.ShapeDtypeStruct((Bp, out_w), out_dtype),
            grid_spec=pltpu.PrefetchScalarGridSpec(
                num_scalar_prefetch=0,
                grid=grid,
                in_specs=[pl.BlockSpec((bt, input_dim), lambda i: (i, 0))]
                         + [weight_spec(w, single_buffer_weights) for w in weights],
                out_specs=pl.BlockSpec((bt, out_w), lambda i: (i, 0)),
            ),
            compiler_params=pltpu.CompilerParams(
                dimension_semantics=("parallel",),
                vmem_limit_bytes=vmem_limit,
            ),
            cost_estimate=cost,
        )

    try:
        slab = build(True)(x, *weights)
    except Exception:
        # Fallback: default (double-buffered) weight pipelining if Buffered(1) is
        # rejected by this JAX/Mosaic version. Weights are tiny at these shapes.
        slab = build(False)(x, *weights)

    slab = slab[:B]
    bias_value = slab[:, bias_lane]                      # == (B, 1).squeeze()
    cls_out = slab[:, :cls_num]
    fea_cls = slab[:, C_slab:C_slab + fea_dim]
    return bias_value, cls_out, fea_cls


def init_params(key, input_dim, hidden_dim, pred_fea_dim, pred_cls_num,
                dtype=jnp.float32):
    """Deterministic synthetic parameters, same shapes as the PyTorch module.

    (PyTorch init uses xavier_normal_ weights + zero biases; we use non-zero random
    biases so the bias path is exercised — forward semantics are unchanged.)
    """
    ks = jax.random.split(key, 13)

    def lin(kw, kb, fan_in, fan_out):
        std = (2.0 / (fan_in + fan_out)) ** 0.5
        w = std * jax.random.normal(kw, (fan_in, fan_out), dtype)
        b = 0.1 * jax.random.normal(kb, (1, fan_out), dtype)
        return w, b

    w1, b1 = lin(ks[0], ks[1], input_dim, hidden_dim)
    w2, b2 = lin(ks[2], ks[3], hidden_dim, pred_fea_dim)
    wr, br = lin(ks[4], ks[5], pred_fea_dim, pred_fea_dim)           # reg_fea
    wc, bc = lin(ks[6], ks[7], pred_fea_dim, pred_fea_dim)           # cls_fea
    wreg, breg = lin(ks[8], ks[9], pred_fea_dim, 1)                  # reg head
    cls_v, cls_b = lin(ks[10], ks[11], pred_fea_dim, pred_cls_num)   # weight-norm "v"
    cls_g = 1.0 + 0.1 * jax.random.normal(ks[12], (1, pred_cls_num), dtype)  # "g"
    return (w1, b1, w2, b2, wr, br, wc, bc, wreg, breg, cls_v, cls_g, cls_b)


def predictor_ref(x, params):
    """Pure-JAX reference with identical semantics (correctness check)."""
    (w1, b1, w2, b2, wr, br, wc, bc, wreg, breg, cls_v, cls_g, cls_b) = params
    h = jnp.maximum(x @ w1 + b1, 0.0)
    h = jnp.maximum(h @ w2 + b2, 0.0)
    fea_reg = h + jnp.maximum(h @ wr + br, 0.0)
    fea_cls = h + (h @ wc + bc)
    bias_value = (fea_reg @ wreg + breg)[:, 0]
    wcls = cls_g * cls_v / jnp.sqrt(jnp.sum(cls_v * cls_v, axis=0, keepdims=True))
    cls_out = fea_cls @ wcls + cls_b
    return bias_value, cls_out, fea_cls


if __name__ == "__main__":
    input_dim, hidden_dim, pred_fea_dim, pred_cls_num = 16, 32, 64, 12
    batch = 16

    key = jax.random.PRNGKey(0)
    kx, kp = jax.random.split(key)
    x = jax.random.normal(kx, (batch, input_dim), jnp.float32)
    params = init_params(kp, input_dim, hidden_dim, pred_fea_dim, pred_cls_num)

    b_ref, c_ref, f_ref = predictor_ref(x, params)

    # 1) Numerically-faithful f32 MXU path (matches the PyTorch module).
    bias_value, cls_out, fea_cls = predictor_forward(x, params, use_bf16_matmul=False)
    jax.block_until_ready((bias_value, cls_out, fea_cls))

    assert bias_value.shape == (batch,)
    assert cls_out.shape == (batch, pred_cls_num)
    assert fea_cls.shape == (batch, pred_fea_dim)
    assert jnp.allclose(bias_value, b_ref, atol=1e-4, rtol=1e-4)
    assert jnp.allclose(cls_out, c_ref, atol=1e-4, rtol=1e-4)
    assert jnp.allclose(fea_cls, f_ref, atol=1e-4, rtol=1e-4)

    # 2) bf16-MXU fast path (default on v6e/v7x): relaxed tolerance vs f32 reference.
    b_bf, c_bf, f_bf = predictor_forward(x, params, use_bf16_matmul=True)
    jax.block_until_ready((b_bf, c_bf, f_bf))
    assert jnp.allclose(b_bf, b_ref, atol=1e-1, rtol=1e-1)
    assert jnp.allclose(c_bf, c_ref, atol=1e-1, rtol=1e-1)
    assert jnp.allclose(f_bf, f_ref, atol=1e-1, rtol=1e-1)

    print("KERNEL_OK")
</pallas_src>

<mosaic_0001>
module attributes {stable_mosaic.version = 11 : i64} {
  func.func @predictor_kernel(%arg0: i32, %arg1: memref<16x16xf32, #tpu.memory_space<vmem>>, %arg2: memref<16x128xf32, #tpu.memory_space<vmem>>, %arg3: memref<1x128xf32, #tpu.memory_space<vmem>>, %arg4: memref<128x128xf32, #tpu.memory_space<vmem>>, %arg5: memref<1x128xf32, #tpu.memory_space<vmem>>, %arg6: memref<128x256xf32, #tpu.memory_space<vmem>>, %arg7: memref<1x256xf32, #tpu.memory_space<vmem>>, %arg8: memref<128x128xf32, #tpu.memory_space<vmem>>, %arg9: memref<1x128xf32, #tpu.memory_space<vmem>>, %arg10: memref<1x128xf32, #tpu.memory_space<vmem>>, %arg11: memref<1x1xf32, #tpu.memory_space<vmem>>, %arg12: memref<16x256xf32, #tpu.memory_space<vmem>>) attributes {dimension_semantics = [#tpu.dimension_semantics<parallel>], iteration_bounds = array<i64: 1>, scalar_prefetch = 0 : i64, scratch_operands = 0 : i64, tpu.core_type = #tpu.core_type<tc>, window_params = [{transform_indices = @transform_0, window_bounds = array<i64: 16, 16>}, {pipeline_mode = #tpu.pipeline_mode<synchronous>, transform_indices = @transform_1, window_bounds = array<i64: 16, 128>}, {pipeline_mode = #tpu.pipeline_mode<synchronous>, transform_indices = @transform_2, window_bounds = array<i64: 1, 128>}, {pipeline_mode = #tpu.pipeline_mode<synchronous>, transform_indices = @transform_3, window_bounds = array<i64: 128, 128>}, {pipeline_mode = #tpu.pipeline_mode<synchronous>, transform_indices = @transform_4, window_bounds = array<i64: 1, 128>}, {pipeline_mode = #tpu.pipeline_mode<synchronous>, transform_indices = @transform_5, window_bounds = array<i64: 128, 256>}, {pipeline_mode = #tpu.pipeline_mode<synchronous>, transform_indices = @transform_6, window_bounds = array<i64: 1, 256>}, {pipeline_mode = #tpu.pipeline_mode<synchronous>, transform_indices = @transform_7, window_bounds = array<i64: 128, 128>}, {pipeline_mode = #tpu.pipeline_mode<synchronous>, transform_indices = @transform_8, window_bounds = array<i64: 1, 128>}, {pipeline_mode = #tpu.pipeline_mode<synchronous>, transform_indices = @transform_9, window_bounds = array<i64: 1, 128>}, {pipeline_mode = #tpu.pipeline_mode<synchronous>, transform_indices = @transform_10, window_bounds = array<i64: 1, 1>}, {transform_indices = @transform_11, window_bounds = array<i64: 16, 256>}]} {
    %c0 = arith.constant 0 : index
    %c0_0 = arith.constant 0 : index
    %0 = vector.load %arg1[%c0, %c0_0] : memref<16x16xf32, #tpu.memory_space<vmem>>, vector<16x16xf32>
    %c0_1 = arith.constant 0 : index
    %c0_2 = arith.constant 0 : index
    %1 = vector.load %arg2[%c0_1, %c0_2] : memref<16x128xf32, #tpu.memory_space<vmem>>, vector<16x128xf32>
    %cst = arith.constant dense<0.000000e+00> : vector<16x128xf32>
    %2 = tpu.matmul %0, %1, %cst {dimension_numbers = #tpu.dot_dimension_numbers<[1], [0], [0], [1], [0, 0, 1, 1], [], []>} : vector<16x16xf32>, vector<16x128xf32>, vector<16x128xf32> -> vector<16x128xf32>
    %c0_3 = arith.constant 0 : index
    %c0_4 = arith.constant 0 : index
    %3 = vector.load %arg3[%c0_3, %c0_4] : memref<1x128xf32, #tpu.memory_space<vmem>>, vector<1x128xf32>
    %4 = vector.broadcast %3 : vector<1x128xf32> to vector<16x128xf32>
    %5 = arith.addf %2, %4 : vector<16x128xf32>
    %cst_5 = arith.constant 0.000000e+00 : f32
    %6 = vector.broadcast %cst_5 : f32 to vector<16x128xf32>
    %7 = arith.maximumf %5, %6 : vector<16x128xf32>
    %c0_6 = arith.constant 0 : index
    %c0_7 = arith.constant 0 : index
    %8 = vector.load %arg4[%c0_6, %c0_7] : memref<128x128xf32, #tpu.memory_space<vmem>>, vector<128x128xf32>
    %cst_8 = arith.constant dense<0.000000e+00> : vector<16x128xf32>
    %9 = tpu.matmul %7, %8, %cst_8 {dimension_numbers = #tpu.dot_dimension_numbers<[1], [0], [0], [1], [0, 0, 1, 1], [], []>} : vector<16x128xf32>, vector<128x128xf32>, vector<16x128xf32> -> vector<16x128xf32>
    %c0_9 = arith.constant 0 : index
    %c0_10 = arith.constant 0 : index
    %10 = vector.load %arg5[%c0_9, %c0_10] : memref<1x128xf32, #tpu.memory_space<vmem>>, vector<1x128xf32>
    %11 = vector.broadcast %10 : vector<1x128xf32> to vector<16x128xf32>
    %12 = arith.addf %9, %11 : vector<16x128xf32>
    %cst_11 = arith.constant 0.000000e+00 : f32
    %13 = vector.broadcast %cst_11 : f32 to vector<16x128xf32>
    %14 = arith.maximumf %12, %13 : vector<16x128xf32>
    %c0_12 = arith.constant 0 : index
    %c0_13 = arith.constant 0 : index
    %15 = vector.load %arg6[%c0_12, %c0_13] : memref<128x256xf32, #tpu.memory_space<vmem>>, vector<128x256xf32>
    %cst_14 = arith.constant dense<0.000000e+00> : vector<16x256xf32>
    %16 = tpu.matmul %14, %15, %cst_14 {dimension_numbers = #tpu.dot_dimension_numbers<[1], [0], [0], [1], [0, 0, 1, 1], [], []>} : vector<16x128xf32>, vector<128x256xf32>, vector<16x256xf32> -> vector<16x256xf32>
    %c0_15 = arith.constant 0 : index
    %c0_16 = arith.constant 0 : index
    %17 = vector.load %arg7[%c0_15, %c0_16] : memref<1x256xf32, #tpu.memory_space<vmem>>, vector<1x256xf32>
    %18 = vector.broadcast %17 : vector<1x256xf32> to vector<16x256xf32>
    %19 = arith.addf %16, %18 : vector<16x256xf32>
    %20 = vector.extract_strided_slice %19 {offsets = [0, 0], sizes = [16, 128], strides = [1, 1]} : vector<16x256xf32> to vector<16x128xf32>
    %cst_17 = arith.constant 0.000000e+00 : f32
    %21 = vector.broadcast %cst_17 : f32 to vector<16x128xf32>
    %22 = arith.maximumf %20, %21 : vector<16x128xf32>
    %23 = arith.addf %14, %22 : vector<16x128xf32>
    %24 = vector.extract_strided_slice %19 {offsets = [0, 128], sizes = [16, 128], strides = [1, 1]} : vector<16x256xf32> to vector<16x128xf32>
    %25 = arith.addf %14, %24 : vector<16x128xf32>
    %c0_18 = arith.constant 0 : index
    %c0_19 = arith.constant 0 : index
    %26 = vector.load %arg10[%c0_18, %c0_19] : memref<1x128xf32, #tpu.memory_space<vmem>>, vector<1x128xf32>
    %27 = vector.broadcast %26 : vector<1x128xf32> to vector<16x128xf32>
    %28 = arith.mulf %23, %27 : vector<16x128xf32>
    %cst_20 = arith.constant dense<0.000000e+00> : vector<16xf32>
    %29 = vector.multi_reduction <add>, %28, %cst_20 [1] : vector<16x128xf32> to vector<16xf32>
    %30 = vector.shape_cast %29 : vector<16xf32> to vector<16x1xf32>
    %c0_21 = arith.constant 0 : index
    %c0_22 = arith.constant 0 : index
    %31 = vector.load %arg11[%c0_21, %c0_22] : memref<1x1xf32, #tpu.memory_space<vmem>>, vector<1x1xf32>
    %32 = vector.broadcast %31 : vector<1x1xf32> to vector<16x1xf32>
    %33 = arith.addf %30, %32 : vector<16x1xf32>
    %c0_23 = arith.constant 0 : index
    %c0_24 = arith.constant 0 : index
    %34 = vector.load %arg8[%c0_23, %c0_24] : memref<128x128xf32, #tpu.memory_space<vmem>>, vector<128x128xf32>
    %cst_25 = arith.constant dense<0.000000e+00> : vector<16x128xf32>
    %35 = tpu.matmul %25, %34, %cst_25 {dimension_numbers = #tpu.dot_dimension_numbers<[1], [0], [0], [1], [0, 0, 1, 1], [], []>} : vector<16x128xf32>, vector<128x128xf32>, vector<16x128xf32> -> vector<16x128xf32>
    %c0_26 = arith.constant 0 : index
    %c0_27 = arith.constant 0 : index
    %36 = vector.load %arg9[%c0_26, %c0_27] : memref<1x128xf32, #tpu.memory_space<vmem>>, vector<1x128xf32>
    %37 = vector.broadcast %36 : vector<1x128xf32> to vector<16x128xf32>
    %38 = arith.addf %35, %37 : vector<16x128xf32>
    %39 = tpu.iota {dimensions = array<i32: 1>} : vector<16x128xi32>
    %c127_i32 = arith.constant 127 : i32
    %40 = vector.broadcast %c127_i32 : i32 to vector<16x128xi32>
    %41 = arith.cmpi eq, %39, %40 : vector<16x128xi32>
    %42 = vector.shape_cast %33 : vector<16x1xf32> to vector<16x1xf32>
    %43 = vector.broadcast %42 : vector<16x1xf32> to vector<16x128xf32>
    %44 = arith.select %41, %43, %38 : vector<16x128xi1>, vector<16x128xf32>
    %c0_28 = arith.constant 0 : index
    %c0_29 = arith.constant 0 : index
    %45 = vector.load %arg12[%c0_28, %c0_29] : memref<16x256xf32, #tpu.memory_space<vmem>>, vector<16x128xf32>
    tpu.vector_store %arg12[%c0_28, %c0_29], %44 {strides = array<i32>} : memref<16x256xf32, #tpu.memory_space<vmem>>, vector<16x128xf32>,
    %c0_30 = arith.constant 0 : index
    %c128 = arith.constant 128 : index
    %46 = vector.load %arg12[%c0_30, %c128] : memref<16x256xf32, #tpu.memory_space<vmem>>, vector<16x128xf32>
    tpu.vector_store %arg12[%c0_30, %c128], %25 {strides = array<i32>} : memref<16x256xf32, #tpu.memory_space<vmem>>, vector<16x128xf32>,
    return
  }
  func.func @transform_0(%arg0: i32) -> (i32, i32) {
    %c0_i32 = arith.constant 0 : i32
    %c0_i32_0 = arith.constant 0 : i32
    return %arg0, %c0_i32 : i32, i32
  }
  func.func @transform_1(%arg0: i32) -> (i32, i32) {
    %c0_i32 = arith.constant 0 : i32
    %c0_i32_0 = arith.constant 0 : i32
    %c0_i32_1 = arith.constant 0 : i32
    return %c0_i32, %c0_i32_0 : i32, i32
  }
  func.func @transform_2(%arg0: i32) -> (i32, i32) {
    %c0_i32 = arith.constant 0 : i32
    %c0_i32_0 = arith.constant 0 : i32
    %c0_i32_1 = arith.constant 0 : i32
    return %c0_i32, %c0_i32_0 : i32, i32
  }
  func.func @transform_3(%arg0: i32) -> (i32, i32) {
    %c0_i32 = arith.constant 0 : i32
    %c0_i32_0 = arith.constant 0 : i32
    %c0_i32_1 = arith.constant 0 : i32
    return %c0_i32, %c0_i32_0 : i32, i32
  }
  func.func @transform_4(%arg0: i32) -> (i32, i32) {
    %c0_i32 = arith.constant 0 : i32
    %c0_i32_0 = arith.constant 0 : i32
    %c0_i32_1 = arith.constant 0 : i32
    return %c0_i32, %c0_i32_0 : i32, i32
  }
  func.func @transform_5(%arg0: i32) -> (i32, i32) {
    %c0_i32 = arith.constant 0 : i32
    %c0_i32_0 = arith.constant 0 : i32
    %c0_i32_1 = arith.constant 0 : i32
    return %c0_i32, %c0_i32_0 : i32, i32
  }
  func.func @transform_6(%arg0: i32) -> (i32, i32) {
    %c0_i32 = arith.constant 0 : i32
    %c0_i32_0 = arith.constant 0 : i32
    %c0_i32_1 = arith.constant 0 : i32
    return %c0_i32, %c0_i32_0 : i32, i32
  }
  func.func @transform_7(%arg0: i32) -> (i32, i32) {
    %c0_i32 = arith.constant 0 : i32
    %c0_i32_0 = arith.constant 0 : i32
    %c0_i32_1 = arith.constant 0 : i32
    return %c0_i32, %c0_i32_0 : i32, i32
  }
  func.func @transform_8(%arg0: i32) -> (i32, i32) {
    %c0_i32 = arith.constant 0 : i32
    %c0_i32_0 = arith.constant 0 : i32
    %c0_i32_1 = arith.constant 0 : i32
    return %c0_i32, %c0_i32_0 : i32, i32
  }
  func.func @transform_9(%arg0: i32) -> (i32, i32) {
    %c0_i32 = arith.constant 0 : i32
    %c0_i32_0 = arith.constant 0 : i32
    %c0_i32_1 = arith.constant 0 : i32
    return %c0_i32, %c0_i32_0 : i32, i32
  }
  func.func @transform_10(%arg0: i32) -> (i32, i32) {
    %c0_i32 = arith.constant 0 : i32
    %c0_i32_0 = arith.constant 0 : i32
    %c0_i32_1 = arith.constant 0 : i32
    return %c0_i32, %c0_i32_0 : i32, i32
  }
  func.func @transform_11(%arg0: i32) -> (i32, i32) {
    %c0_i32 = arith.constant 0 : i32
    %c0_i32_0 = arith.constant 0 : i32
    return %arg0, %c0_i32 : i32, i32
  }
}

module attributes {stable_mosaic.version = 11 : i64} {
  func.func @predictor_kernel(%arg0: i32, %arg1: memref<16x16xf32, #tpu.memory_space<vmem>>, %arg2: memref<16x128xf32, #tpu.memory_space<vmem>>, %arg3: memref<1x128xf32, #tpu.memory_space<vmem>>, %arg4: memref<128x128xf32, #tpu.memory_space<vmem>>, %arg5: memref<1x128xf32, #tpu.memory_space<vmem>>, %arg6: memref<128x256xf32, #tpu.memory_space<vmem>>, %arg7: memref<1x256xf32, #tpu.memory_space<vmem>>, %arg8: memref<128x128xf32, #tpu.memory_space<vmem>>, %arg9: memref<1x128xf32, #tpu.memory_space<vmem>>, %arg10: memref<1x128xf32, #tpu.memory_space<vmem>>, %arg11: memref<1x1xf32, #tpu.memory_space<vmem>>, %arg12: memref<16x256xf32, #tpu.memory_space<vmem>>) attributes {dimension_semantics = [#tpu.dimension_semantics<parallel>], iteration_bounds = array<i64: 1>, scalar_prefetch = 0 : i64, scratch_operands = 0 : i64, tpu.core_type = #tpu.core_type<tc>, window_params = [{transform_indices = @transform_0, window_bounds = array<i64: 16, 16>}, {pipeline_mode = #tpu.pipeline_mode<synchronous>, transform_indices = @transform_1, window_bounds = array<i64: 16, 128>}, {pipeline_mode = #tpu.pipeline_mode<synchronous>, transform_indices = @transform_2, window_bounds = array<i64: 1, 128>}, {pipeline_mode = #tpu.pipeline_mode<synchronous>, transform_indices = @transform_3, window_bounds = array<i64: 128, 128>}, {pipeline_mode = #tpu.pipeline_mode<synchronous>, transform_indices = @transform_4, window_bounds = array<i64: 1, 128>}, {pipeline_mode = #tpu.pipeline_mode<synchronous>, transform_indices = @transform_5, window_bounds = array<i64: 128, 256>}, {pipeline_mode = #tpu.pipeline_mode<synchronous>, transform_indices = @transform_6, window_bounds = array<i64: 1, 256>}, {pipeline_mode = #tpu.pipeline_mode<synchronous>, transform_indices = @transform_7, window_bounds = array<i64: 128, 128>}, {pipeline_mode = #tpu.pipeline_mode<synchronous>, transform_indices = @transform_8, window_bounds = array<i64: 1, 128>}, {pipeline_mode = #tpu.pipeline_mode<synchronous>, transform_indices = @transform_9, window_bounds = array<i64: 1, 128>}, {pipeline_mode = #tpu.pipeline_mode<synchronous>, transform_indices = @transform_10, window_bounds = array<i64: 1, 1>}, {transform_indices = @transform_11, window_bounds = array<i64: 16, 256>}]} {
    %c0 = arith.constant 0 : index
    %c0_0 = arith.constant 0 : index
    %0 = vector.load %arg1[%c0, %c0_0] : memref<16x16xf32, #tpu.memory_space<vmem>>, vector<16x16xf32>
    %c0_1 = arith.constant 0 : index
    %c0_2 = arith.constant 0 : index
    %1 = vector.load %arg2[%c0_1, %c0_2] : memref<16x128xf32, #tpu.memory_space<vmem>>, vector<16x128xf32>
    %cst = arith.constant dense<0.000000e+00> : vector<16x128xf32>
    %2 = tpu.matmul %0, %1, %cst {dimension_numbers = #tpu.dot_dimension_numbers<[1], [0], [0], [1], [0, 0, 1, 1], [], []>} : vector<16x16xf32>, vector<16x128xf32>, vector<16x128xf32> -> vector<16x128xf32>
    %c0_3 = arith.constant 0 : index
    %c0_4 = arith.constant 0 : index
    %3 = vector.load %arg3[%c0_3, %c0_4] : memref<1x128xf32, #tpu.memory_space<vmem>>, vector<1x128xf32>
    %4 = vector.broadcast %3 : vector<1x128xf32> to vector<16x128xf32>
    %5 = arith.addf %2, %4 : vector<16x128xf32>
    %cst_5 = arith.constant 0.000000e+00 : f32
    %6 = vector.broadcast %cst_5 : f32 to vector<16x128xf32>
    %7 = arith.maximumf %5, %6 : vector<16x128xf32>
    %c0_6 = arith.constant 0 : index
    %c0_7 = arith.constant 0 : index
    %8 = vector.load %arg4[%c0_6, %c0_7] : memref<128x128xf32, #tpu.memory_space<vmem>>, vector<128x128xf32>
    %cst_8 = arith.constant dense<0.000000e+00> : vector<16x128xf32>
    %9 = tpu.matmul %7, %8, %cst_8 {dimension_numbers = #tpu.dot_dimension_numbers<[1], [0], [0], [1], [0, 0, 1, 1], [], []>} : vector<16x128xf32>, vector<128x128xf32>, vector<16x128xf32> -> vector<16x128xf32>
    %c0_9 = arith.constant 0 : index
    %c0_10 = arith.constant 0 : index
    %10 = vector.load %arg5[%c0_9, %c0_10] : memref<1x128xf32, #tpu.memory_space<vmem>>, vector<1x128xf32>
    %11 = vector.broadcast %10 : vector<1x128xf32> to vector<16x128xf32>
    %12 = arith.addf %9, %11 : vector<16x128xf32>
    %cst_11 = arith.constant 0.000000e+00 : f32
    %13 = vector.broadcast %cst_11 : f32 to vector<16x128xf32>
    %14 = arith.maximumf %12, %13 : vector<16x128xf32>
    %c0_12 = arith.constant 0 : index
    %c0_13 = arith.constant 0 : index
    %15 = vector.load %arg6[%c0_12, %c0_13] : memref<128x256xf32, #tpu.memory_space<vmem>>, vector<128x256xf32>
    %cst_14 = arith.constant dense<0.000000e+00> : vector<16x256xf32>
    %16 = tpu.matmul %14, %15, %cst_14 {dimension_numbers = #tpu.dot_dimension_numbers<[1], [0], [0], [1], [0, 0, 1, 1], [], []>} : vector<16x128xf32>, vector<128x256xf32>, vector<16x256xf32> -> vector<16x256xf32>
    %c0_15 = arith.constant 0 : index
    %c0_16 = arith.constant 0 : index
    %17 = vector.load %arg7[%c0_15, %c0_16] : memref<1x256xf32, #tpu.memory_space<vmem>>, vector<1x256xf32>
    %18 = vector.broadcast %17 : vector<1x256xf32> to vector<16x256xf32>
    %19 = arith.addf %16, %18 : vector<16x256xf32>
    %20 = vector.extract_strided_slice %19 {offsets = [0, 0], sizes = [16, 128], strides = [1, 1]} : vector<16x256xf32> to vector<16x128xf32>
    %cst_17 = arith.constant 0.000000e+00 : f32
    %21 = vector.broadcast %cst_17 : f32 to vector<16x128xf32>
    %22 = arith.maximumf %20, %21 : vector<16x128xf32>
    %23 = arith.addf %14, %22 : vector<16x128xf32>
    %24 = vector.extract_strided_slice %19 {offsets = [0, 128], sizes = [16, 128], strides = [1, 1]} : vector<16x256xf32> to vector<16x128xf32>
    %25 = arith.addf %14, %24 : vector<16x128xf32>
    %c0_18 = arith.constant 0 : index
    %c0_19 = arith.constant 0 : index
    %26 = vector.load %arg10[%c0_18, %c0_19] : memref<1x128xf32, #tpu.memory_space<vmem>>, vector<1x128xf32>
    %27 = vector.broadcast %26 : vector<1x128xf32> to vector<16x128xf32>
    %28 = arith.mulf %23, %27 : vector<16x128xf32>
    %cst_20 = arith.constant dense<0.000000e+00> : vector<16xf32>
    %29 = vector.multi_reduction <add>, %28, %cst_20 [1] : vector<16x128xf32> to vector<16xf32>
    %30 = vector.shape_cast %29 : vector<16xf32> to vector<16x1xf32>
    %c0_21 = arith.constant 0 : index
    %c0_22 = arith.constant 0 : index
    %31 = vector.load %arg11[%c0_21, %c0_22] : memref<1x1xf32, #tpu.memory_space<vmem>>, vector<1x1xf32>
    %32 = vector.broadcast %31 : vector<1x1xf32> to vector<16x1xf32>
    %33 = arith.addf %30, %32 : vector<16x1xf32>
    %c0_23 = arith.constant 0 : index
    %c0_24 = arith.constant 0 : index
    %34 = vector.load %arg8[%c0_23, %c0_24] : memref<128x128xf32, #tpu.memory_space<vmem>>, vector<128x128xf32>
    %cst_25 = arith.constant dense<0.000000e+00> : vector<16x128xf32>
    %35 = tpu.matmul %25, %34, %cst_25 {dimension_numbers = #tpu.dot_dimension_numbers<[1], [0], [0], [1], [0, 0, 1, 1], [], []>} : vector<16x128xf32>, vector<128x128xf32>, vector<16x128xf32> -> vector<16x128xf32>
    %c0_26 = arith.constant 0 : index
    %c0_27 = arith.constant 0 : index
    %36 = vector.load %arg9[%c0_26, %c0_27] : memref<1x128xf32, #tpu.memory_space<vmem>>, vector<1x128xf32>
    %37 = vector.broadcast %36 : vector<1x128xf32> to vector<16x128xf32>
    %38 = arith.addf %35, %37 : vector<16x128xf32>
    %39 = tpu.iota {dimensions = array<i32: 1>} : vector<16x128xi32>
    %c127_i32 = arith.constant 127 : i32
    %40 = vector.broadcast %c127_i32 : i32 to vector<16x128xi32>
    %41 = arith.cmpi eq, %39, %40 : vector<16x128xi32>
    %42 = vector.shape_cast %33 : vector<16x1xf32> to vector<16x1xf32>
    %43 = vector.broadcast %42 : vector<16x1xf32> to vector<16x128xf32>
    %44 = arith.select %41, %43, %38 : vector<16x128xi1>, vector<16x128xf32>
    %c0_28 = arith.constant 0 : index
    %c0_29 = arith.constant 0 : index
    %45 = vector.load %arg12[%c0_28, %c0_29] : memref<16x256xf32, #tpu.memory_space<vmem>>, vector<16x128xf32>
    tpu.vector_store %arg12[%c0_28, %c0_29], %44 {strides = array<i32>} : memref<16x256xf32, #tpu.memory_space<vmem>>, vector<16x128xf32>,
    %c0_30 = arith.constant 0 : index
    %c128 = arith.constant 128 : index
    %46 = vector.load %arg12[%c0_30, %c128] : memref<16x256xf32, #tpu.memory_space<vmem>>, vector<16x128xf32>
    tpu.vector_store %arg12[%c0_30, %c128], %25 {strides = array<i32>} : memref<16x256xf32, #tpu.memory_space<vmem>>, vector<16x128xf32>,
    return
  }
  func.func @transform_0(%arg0: i32) -> (i32, i32) {
    %c0_i32 = arith.constant 0 : i32
    %c0_i32_0 = arith.constant 0 : i32
    return %arg0, %c0_i32 : i32, i32
  }
  func.func @transform_1(%arg0: i32) -> (i32, i32) {
    %c0_i32 = arith.constant 0 : i32
    %c0_i32_0 = arith.constant 0 : i32
    %c0_i32_1 = arith.constant 0 : i32
    return %c0_i32, %c0_i32_0 : i32, i32
  }
  func.func @transform_2(%arg0: i32) -> (i32, i32) {
    %c0_i32 = arith.constant 0 : i32
    %c0_i32_0 = arith.constant 0 : i32
    %c0_i32_1 = arith.constant 0 : i32
    return %c0_i32, %c0_i32_0 : i32, i32
  }
  func.func @transform_3(%arg0: i32) -> (i32, i32) {
    %c0_i32 = arith.constant 0 : i32
    %c0_i32_0 = arith.constant 0 : i32
    %c0_i32_1 = arith.constant 0 : i32
    return %c0_i32, %c0_i32_0 : i32, i32
  }
  func.func @transform_4(%arg0: i32) -> (i32, i32) {
    %c0_i32 = arith.constant 0 : i32
    %c0_i32_0 = arith.constant 0 : i32
    %c0_i32_1 = arith.constant 0 : i32
    return %c0_i32, %c0_i32_0 : i32, i32
  }
  func.func @transform_5(%arg0: i32) -> (i32, i32) {
    %c0_i32 = arith.constant 0 : i32
    %c0_i32_0 = arith.constant 0 : i32
    %c0_i32_1 = arith.constant 0 : i32
    return %c0_i32, %c0_i32_0 : i32, i32
  }
  func.func @transform_6(%arg0: i32) -> (i32, i32) {
    %c0_i32 = arith.constant 0 : i32
    %c0_i32_0 = arith.constant 0 : i32
    %c0_i32_1 = arith.constant 0 : i32
    return %c0_i32, %c0_i32_0 : i32, i32
  }
  func.func @transform_7(%arg0: i32) -> (i32, i32) {
    %c0_i32 = arith.constant 0 : i32
    %c0_i32_0 = arith.constant 0 : i32
    %c0_i32_1 = arith.constant 0 : i32
    return %c0_i32, %c0_i32_0 : i32, i32
  }
  func.func @transform_8(%arg0: i32) -> (i32, i32) {
    %c0_i32 = arith.constant 0 : i32
    %c0_i32_0 = arith.constant 0 : i32
    %c0_i32_1 = arith.constant 0 : i32
    return %c0_i32, %c0_i32_0 : i32, i32
  }
  func.func @transform_9(%arg0: i32) -> (i32, i32) {
    %c0_i32 = arith.constant 0 : i32
    %c0_i32_0 = arith.constant 0 : i32
    %c0_i32_1 = arith.constant 0 : i32
    return %c0_i32, %c0_i32_0 : i32, i32
  }
  func.func @transform_10(%arg0: i32) -> (i32, i32) {
    %c0_i32 = arith.constant 0 : i32
    %c0_i32_0 = arith.constant 0 : i32
    %c0_i32_1 = arith.constant 0 : i32
    return %c0_i32, %c0_i32_0 : i32, i32
  }
  func.func @transform_11(%arg0: i32) -> (i32, i32) {
    %c0_i32 = arith.constant 0 : i32
    %c0_i32_0 = arith.constant 0 : i32
    return %arg0, %c0_i32 : i32, i32
  }
}

</mosaic_0001>

<llo_original>
// kernel: tpu_custom_call.1
$region0: #{tpu_custom_call.1}
  #allocation0 [shape = 'u32[]', space=smem, size = 0x4, offset = 0x4, fixed_abs, tag = 'smem constant byte address 0x4 - core index']
  #allocation1 [shape = 'u32[144,128]{1,0:T(1,128)}', space=vmem, size = 0x12000, scoped, tag = 'internal scratch']
  #allocation2 [shape = 'f32[1,1]{1,0:T(1,128)S(1)}', space=vmem, size = 0x200, scoped, tag = 'scoped memory for tpu_custom_call.1']
  %s0 = inlined_call_operand.hbm [shape: f32[16,16], index: 0, kind: input, shape index: {}]
  %s1 = inlined_call_operand.hbm [shape: f32[16,128], index: 1, kind: input, shape index: {}]
  %s2 = inlined_call_operand.vmem [shape: f32[1,128], index: 2, kind: input, shape index: {}]
  %s3 = inlined_call_operand.hbm [shape: f32[128,128], index: 3, kind: input, shape index: {}]
  %s4 = inlined_call_operand.vmem [shape: f32[1,128], index: 4, kind: input, shape index: {}]
  %s5 = inlined_call_operand.hbm [shape: f32[128,256], index: 5, kind: input, shape index: {}]
  %s6 = inlined_call_operand.vmem [shape: f32[1,256], index: 6, kind: input, shape index: {}]
  %s7 = inlined_call_operand.hbm [shape: f32[128,128], index: 7, kind: input, shape index: {}]
  %s8 = inlined_call_operand.vmem [shape: f32[1,128], index: 8, kind: input, shape index: {}]
  %s9 = inlined_call_operand.vmem [shape: f32[1,128], index: 9, kind: input, shape index: {}]
  %s10 = inlined_call_operand.<no memory space> [shape: f32[1,1], index: 10, kind: input, shape index: {}]
  %s11 = inlined_call_operand.hbm [shape: f32[16,256], index: 11, kind: output, shape index: {}]
  %s12 = sld [smem:[#allocation0]]
  $region74: #{tpu_custom_call.1} parent=0
    _
  %s14 = ssub.s32 1, %s12
  %s15 = scalar_select 0, %s14, %s12
  %v16 = vstv %s10
  %17 = vst [vmem:[#allocation2] sm:$0x1] %v16
  $region1: #{tpu_custom_call.1} parent=0
    #allocation3 [shape = 'u8[8192]{0}', space=vmem, size = 0x2000, scoped, tag = 'input window, operand 0, single buffered']
    #allocation4 [shape = 's32[1]{0}', space=sflag, size = 0x4, scoped, tag = 'scoped memory for tpu_custom_call.1']
    #allocation5 [shape = 's32[1]{0}', space=sflag, size = 0x4, scoped, tag = 'scoped memory for tpu_custom_call.1']
    #allocation6 [shape = 'u8[8192]{0}', space=vmem, size = 0x2000, scoped, tag = 'input window, operand 1, single buffered']
    #allocation7 [shape = 's32[1]{0}', space=sflag, size = 0x4, scoped, tag = 'scoped memory for tpu_custom_call.1']
    #allocation8 [shape = 'u8[65536]{0}', space=vmem, size = 0x10000, scoped, tag = 'input window, operand 3, single buffered']
    #allocation9 [shape = 'u8[131072]{0}', space=vmem, size = 0x20000, scoped, tag = 'input window, operand 5, single buffered']
    #allocation10 [shape = 's32[1]{0}', space=sflag, size = 0x4, scoped, tag = 'scoped memory for tpu_custom_call.1']
    #allocation11 [shape = 'u8[65536]{0}', space=vmem, size = 0x10000, scoped, tag = 'input window, operand 7, single buffered']
    #allocation12 [shape = 'u8[16384]{0}', space=vmem, size = 0x4000, scoped, tag = 'output window, operand 0, single buffered']
    %18 = vsyncpa [#allocation4], 0
    %19 = vsyncpa [#allocation7], 0
    %20 = vsyncpa [#allocation10], 0
    %21 = vsyncpa [#allocation5], 0
    // Predicated region
    $region2: #{tpu_custom_call.1} parent=1 // pred_check
      _
    $region3: #{tpu_custom_call.1} parent=1 // pred_check_branch
      %23 = sbr.rel (0) target = $region5
    $region4: #{tpu_custom_call.1} parent=1 // pred_region
      %s25 = ssub.s32 256, 256
      %26 = vsyncadd [#allocation4], %s25
      %s27 = sshll.u32 [#allocation3], 4
      %s28 = int_to_ptr.vmem [resolvable:$true] %s27
      %33 = dma.hbm_to_vmem [thread:$0]  %s0, 256, %s28, [#allocation4], 128, 128, 8
    $region5: #{tpu_custom_call.1} parent=1 // pred_fallthru
      _
    // Predicated region
    $region6: #{tpu_custom_call.1} parent=1 // pred_check
      _
    $region7: #{tpu_custom_call.1} parent=1 // pred_check_branch
      %35 = sbr.rel (0) target = $region9
    $region8: #{tpu_custom_call.1} parent=1 // pred_region
      %s37 = ssub.s32 256, 256
      %38 = vsyncadd [#allocation7], %s37
      %s39 = sshll.u32 [#allocation6], 4
      %s40 = int_to_ptr.vmem [resolvable:$true] %s39
      %45 = dma.hbm_to_vmem [thread:$0]  %s1, 256, %s40, [#allocation7], 128, 128, 8
    $region9: #{tpu_custom_call.1} parent=1 // pred_fallthru
      _
    // Predicated region
    $region10: #{tpu_custom_call.1} parent=1 // pred_check
      _
    $region11: #{tpu_custom_call.1} parent=1 // pred_check_branch
      %47 = sbr.rel (0) target = $region13
    $region12: #{tpu_custom_call.1} parent=1 // pred_region
      _
    $region13: #{tpu_custom_call.1} parent=1 // pred_fallthru
      _
    // Predicated region
    $region14: #{tpu_custom_call.1} parent=1 // pred_check
      _
    $region15: #{tpu_custom_call.1} parent=1 // pred_check_branch
      %49 = sbr.rel (0) target = $region17
    $region16: #{tpu_custom_call.1} parent=1 // pred_region
      %s51 = ssub.s32 2048, 2048
      %52 = vsyncadd [#allocation7], %s51
      %s53 = sshll.u32 [#allocation8], 4
      %s54 = int_to_ptr.vmem [resolvable:$true] %s53
      %59 = dma.hbm_to_vmem [thread:$0]  %s3, 2048, %s54, [#allocation7], 128, 128, 8
    $region17: #{tpu_custom_call.1} parent=1 // pred_fallthru
      _
    // Predicated region
    $region18: #{tpu_custom_call.1} parent=1 // pred_check
      _
    $region19: #{tpu_custom_call.1} parent=1 // pred_check_branch
      %61 = sbr.rel (0) target = $region21
    $region20: #{tpu_custom_call.1} parent=1 // pred_region
      _
    $region21: #{tpu_custom_call.1} parent=1 // pred_fallthru
      _
    // Predicated region
    $region22: #{tpu_custom_call.1} parent=1 // pred_check
      _
    $region23: #{tpu_custom_call.1} parent=1 // pred_check_branch
      %63 = sbr.rel (0) target = $region25
    $region24: #{tpu_custom_call.1} parent=1 // pred_region
      %s65 = ssub.s32 4096, 4096
      %66 = vsyncadd [#allocation10], %s65
      %s67 = sshll.u32 [#allocation9], 4
      %s68 = int_to_ptr.vmem [resolvable:$true] %s67
      %73 = dma.hbm_to_vmem [thread:$0]  %s5, 4096, %s68, [#allocation10], 256, 256, 16
    $region25: #{tpu_custom_call.1} parent=1 // pred_fallthru
      _
    // Predicated region
    $region26: #{tpu_custom_call.1} parent=1 // pred_check
      _
    $region27: #{tpu_custom_call.1} parent=1 // pred_check_branch
      %75 = sbr.rel (0) target = $region29
    $region28: #{tpu_custom_call.1} parent=1 // pred_region
      _
    $region29: #{tpu_custom_call.1} parent=1 // pred_fallthru
      _
    // Predicated region
    $region30: #{tpu_custom_call.1} parent=1 // pred_check
      _
    $region31: #{tpu_custom_call.1} parent=1 // pred_check_branch
      %77 = sbr.rel (0) target = $region33
    $region32: #{tpu_custom_call.1} parent=1 // pred_region
      %s79 = ssub.s32 2048, 2048
      %80 = vsyncadd [#allocation10], %s79
      %s81 = sshll.u32 [#allocation11], 4
      %s82 = int_to_ptr.vmem [resolvable:$true] %s81
      %87 = dma.hbm_to_vmem [thread:$0]  %s7, 2048, %s82, [#allocation10], 128, 128, 8
    $region33: #{tpu_custom_call.1} parent=1 // pred_fallthru
      _
    // Predicated region
    $region34: #{tpu_custom_call.1} parent=1 // pred_check
      _
    $region35: #{tpu_custom_call.1} parent=1 // pred_check_branch
      %89 = sbr.rel (0) target = $region37
    $region36: #{tpu_custom_call.1} parent=1 // pred_region
      _
    $region37: #{tpu_custom_call.1} parent=1 // pred_fallthru
      _
    // Predicated region
    $region38: #{tpu_custom_call.1} parent=1 // pred_check
      _
    $region39: #{tpu_custom_call.1} parent=1 // pred_check_branch
      %91 = sbr.rel (0) target = $region41
    $region40: #{tpu_custom_call.1} parent=1 // pred_region
      _
    $region41: #{tpu_custom_call.1} parent=1 // pred_fallthru
      _
    // Predicated region
    $region42: #{tpu_custom_call.1} parent=1 // pred_check
      _
    $region43: #{tpu_custom_call.1} parent=1 // pred_check_branch
      %93 = sbr.rel (0) target = $region45
    $region44: #{tpu_custom_call.1} parent=1 // pred_region
      _
    $region45: #{tpu_custom_call.1} parent=1 // pred_fallthru
      _
    // Predicated region
    $region46: #{tpu_custom_call.1} parent=1 // pred_check
      _
    $region47: #{tpu_custom_call.1} parent=1 // pred_check_branch
      %95 = sbr.rel (0) target = $region49
    $region48: #{tpu_custom_call.1} parent=1 // pred_region
      %96 = dma.done [#allocation4], 256
    $region49: #{tpu_custom_call.1} parent=1 // pred_fallthru
      _
    // Predicated region
    $region50: #{tpu_custom_call.1} parent=1 // pred_check
      _
    $region51: #{tpu_custom_call.1} parent=1 // pred_check_branch
      %98 = sbr.rel (0) target = $region53
    $region52: #{tpu_custom_call.1} parent=1 // pred_region
      %99 = dma.done [#allocation7], 256
    $region53: #{tpu_custom_call.1} parent=1 // pred_fallthru
      _
    // Predicated region
    $region54: #{tpu_custom_call.1} parent=1 // pred_check
      _
    $region55: #{tpu_custom_call.1} parent=1 // pred_check_branch
      %101 = sbr.rel (0) target = $region57
    $region56: #{tpu_custom_call.1} parent=1 // pred_region
      %102 = dma.done [#allocation7], 2048
    $region57: #{tpu_custom_call.1} parent=1 // pred_fallthru
      _
    // Predicated region
    $region58: #{tpu_custom_call.1} parent=1 // pred_check
      _
    $region59: #{tpu_custom_call.1} parent=1 // pred_check_branch
      %104 = sbr.rel (0) target = $region61
    $region60: #{tpu_custom_call.1} parent=1 // pred_region
      %105 = dma.done [#allocation10], 4096
    $region61: #{tpu_custom_call.1} parent=1 // pred_fallthru
      _
    // Predicated region
    $region62: #{tpu_custom_call.1} parent=1 // pred_check
      _
    $region63: #{tpu_custom_call.1} parent=1 // pred_check_branch
      %107 = sbr.rel (0) target = $region65
    $region64: #{tpu_custom_call.1} parent=1 // pred_region
      %108 = dma.done [#allocation10], 2048
    $region65: #{tpu_custom_call.1} parent=1 // pred_fallthru
      _
    %v109 = vld [vmem:[#allocation3] sm:$0xff]
    %v110 = vld [vmem:[#allocation3 + $0x8] sm:$0xff]
    %v111 = vld [vmem:[#allocation6] sm:$0xff]
    %v112 = vld [vmem:[#allocation6 + $0x8] sm:$0xff]
    %v113 = vld [vmem:[%s2] sm:$0x1]
    %v115 = vlaneseq
    %v116 = vshrl.u32 %v115, 7
    %v117 = vsub.s32 0, %v116
    %v118 = vrot.slane %v113, %v117
    %vm120 = vcmask 130048
    %v122 = vsel %vm120, %v109, 0
    %v125 = vsel %vm120, %v110, 0
    %127 = vmatprep.subr.mxu0 0.0
    %128 = vmatpush1.msra.mxu0 %v111
    %129 = vmatprep.subr.mxu0 0.0
    %130 = vmatpush1.msra.mxu0 %v112
    %131 = vmatprep.subr.mxu0 0.0
    %132 = vmatpush1.msra.mxu0 0.0
    %133 = vmatprep.subr.mxu0 0.0
    %134 = vmatpush1.msra.mxu0 0.0
    %135 = vmatprep.subr.mxu0 0.0
    %136 = vmatpush1.msra.mxu0 0.0
    %137 = vmatprep.subr.mxu0 0.0
    %138 = vmatpush1.msra.mxu0 0.0
    %139 = vmatprep.subr.mxu0 0.0
    %140 = vmatpush1.msra.mxu0 0.0
    %141 = vmatprep.subr.mxu0 0.0
    %142 = vmatpush1.msra.mxu0 0.0
    %143 = vmatprep.subr.mxu0 0.0
    %144 = vmatpush1.msra.mxu0 0.0
    %145 = vmatprep.subr.mxu0 0.0
    %146 = vmatpush1.msra.mxu0 0.0
    %147 = vmatprep.subr.mxu0 0.0
    %148 = vmatpush1.msra.mxu0 0.0
    %149 = vmatprep.subr.mxu0 0.0
    %150 = vmatpush1.msra.mxu0 0.0
    %151 = vmatprep.subr.mxu0 0.0
    %152 = vmatpush1.msra.mxu0 0.0
    %153 = vmatprep.subr.mxu0 0.0
    %154 = vmatpush1.msra.mxu0 0.0
    %155 = vmatprep.subr.mxu0 0.0
    %156 = vmatpush1.msra.mxu0 0.0
    %157 = vmatprep.subr.mxu0 0.0
    %158 = vmatpush1.msra.mxu0 0.0
    %159 = vmatprep.subr.mxu0 0.0
    %160 = vmatpush1.msra.mxu0 0.0
    %161 = vmatprep.subr.mxu0 0.0
    %162 = vmatpush1.msra.mxu0 0.0
    %163 = vmatprep.subr.mxu0 0.0
    %164 = vmatpush1.msra.mxu0 0.0
    %165 = vmatprep.subr.mxu0 0.0
    %166 = vmatpush1.msra.mxu0 0.0
    %167 = vmatprep.subr.mxu0 0.0
    %168 = vmatpush1.msra.mxu0 0.0
    %169 = vmatprep.subr.mxu0 0.0
    %170 = vmatpush1.msra.mxu0 0.0
    %171 = vmatprep.subr.mxu0 0.0
    %172 = vmatpush1.msra.mxu0 0.0
    %173 = vmatprep.subr.mxu0 0.0
    %174 = vmatpush1.msra.mxu0 0.0
    %175 = vmatprep.subr.mxu0 0.0
    %176 = vmatpush1.msra.mxu0 0.0
    %177 = vmatprep.subr.mxu0 0.0
    %178 = vmatpush1.msra.mxu0 0.0
    %179 = vmatprep.subr.mxu0 0.0
    %180 = vmatpush1.msra.mxu0 0.0
    %181 = vmatprep.subr.mxu0 0.0
    %182 = vmatpush1.msra.mxu0 0.0
    %183 = vmatprep.subr.mxu0 0.0
    %184 = vmatpush1.msra.mxu0 0.0
    %185 = vmatprep.subr.mxu0 0.0
    %186 = vmatpush1.msra.mxu0 0.0
    %187 = vmatprep.subr.mxu0 0.0
    %188 = vmatpush1.msra.mxu0 0.0
    %189 = vmatprep.subr.mxu0 0.0
    %190 = vmatpush1.msra.mxu0 0.0
    %191 = vmatprep.mubr.f32.mxu0 0.0
    %192 = vmatmul.mubr.f32.gmra.mrb[0].mxu0 %v122
    %v193 = vpop.f32.mrb[0].mxu0
    %v194 = vadd.f32 %v118, %v193
    %v195 = vpop.f32.mrb[0].mxu0
    %196 = vmatprep.mubr.f32.mxu0 0.0
    %197 = vmatmul.mubr.f32.gmra.mrb[0].mxu0 %v125
    %v198 = vpop.f32.mrb[0].mxu0
    %v199 = vadd.f32 %v118, %v198
    %v200 = vpop.f32.mrb[0].mxu0
    %201 = vdwg.mxu0
    %v202 = vmax.f32 %v194, 0.0
    %v203 = vmax.f32 %v199, 0.0
    %v204 = vld [vmem:[#allocation8] sm:$0xff]
    %v205 = vld [vmem:[#allocation8 + $0x8] sm:$0xff]
    %v206 = vld [vmem:[#allocation8 + $0x10] sm:$0xff]
    %v207 = vld [vmem:[#allocation8 + $0x18] sm:$0xff]
    %v208 = vld [vmem:[#allocation8 + $0x20] sm:$0xff]
    %v209 = vld [vmem:[#allocation8 + $0x28] sm:$0xff]
    %v210 = vld [vmem:[#allocation8 + $0x30] sm:$0xff]
    %v211 = vld [vmem:[#allocation8 + $0x38] sm:$0xff]
    %v212 = vld [vmem:[#allocation8 + $0x40] sm:$0xff]
    %v213 = vld [vmem:[#allocation8 + $0x48] sm:$0xff]
    %v214 = vld [vmem:[#allocation8 + $0x50] sm:$0xff]
    %v215 = vld [vmem:[#allocation8 + $0x58] sm:$0xff]
    %v216 = vld [vmem:[#allocation8 + $0x60] sm:$0xff]
    %v217 = vld [vmem:[#allocation8 + $0x68] sm:$0xff]
    %v218 = vld [vmem:[#allocation8 + $0x70] sm:$0xff]
    %v219 = vld [vmem:[#allocation8 + $0x78] sm:$0xff]
    %v220 = vld [vmem:[%s4] sm:$0x1]
    %v222 = vlaneseq
    %v223 = vshrl.u32 %v222, 7
    %v224 = vsub.s32 0, %v223
    %v225 = vrot.slane %v220, %v224
    %227 = vmatprep.subr.mxu0 0.0
    %228 = vmatpush1.msra.mxu0 %v204
    %229 = vmatprep.subr.mxu0 0.0
    %230 = vmatpush1.msra.mxu0 %v205
    %231 = vmatprep.subr.mxu0 0.0
    %232 = vmatpush1.msra.mxu0 %v206
    %233 = vmatprep.subr.mxu0 0.0
    %234 = vmatpush1.msra.mxu0 %v207
    %235 = vmatprep.subr.mxu0 0.0
    %236 = vmatpush1.msra.mxu0 %v208
    %237 = vmatprep.subr.mxu0 0.0
    %238 = vmatpush1.msra.mxu0 %v209
    %239 = vmatprep.subr.mxu0 0.0
    %240 = vmatpush1.msra.mxu0 %v210
    %241 = vmatprep.subr.mxu0 0.0
    %242 = vmatpush1.msra.mxu0 %v211
    %243 = vmatprep.subr.mxu0 0.0
    %244 = vmatpush1.msra.mxu0 %v212
    %245 = vmatprep.subr.mxu0 0.0
    %246 = vmatpush1.msra.mxu0 %v213
    %247 = vmatprep.subr.mxu0 0.0
    %248 = vmatpush1.msra.mxu0 %v214
    %249 = vmatprep.subr.mxu0 0.0
    %250 = vmatpush1.msra.mxu0 %v215
    %251 = vmatprep.subr.mxu0 0.0
    %252 = vmatpush1.msra.mxu0 %v216
    %253 = vmatprep.subr.mxu0 0.0
    %254 = vmatpush1.msra.mxu0 %v217
    %255 = vmatprep.subr.mxu0 0.0
    %256 = vmatpush1.msra.mxu0 %v218
    %257 = vmatprep.subr.mxu0 0.0
    %258 = vmatpush1.msra.mxu0 %v219
    %259 = vmatprep.subr.mxu0 0.0
    %260 = vmatpush1.msra.mxu0 0.0
    %261 = vmatprep.subr.mxu0 0.0
    %262 = vmatpush1.msra.mxu0 0.0
    %263 = vmatprep.subr.mxu0 0.0
    %264 = vmatpush1.msra.mxu0 0.0
    %265 = vmatprep.subr.mxu0 0.0
    %266 = vmatpush1.msra.mxu0 0.0
    %267 = vmatprep.subr.mxu0 0.0
    %268 = vmatpush1.msra.mxu0 0.0
    %269 = vmatprep.subr.mxu0 0.0
    %270 = vmatpush1.msra.mxu0 0.0
    %271 = vmatprep.subr.mxu0 0.0
    %272 = vmatpush1.msra.mxu0 0.0
    %273 = vmatprep.subr.mxu0 0.0
    %274 = vmatpush1.msra.mxu0 0.0
    %275 = vmatprep.subr.mxu0 0.0
    %276 = vmatpush1.msra.mxu0 0.0
    %277 = vmatprep.subr.mxu0 0.0
    %278 = vmatpush1.msra.mxu0 0.0
    %279 = vmatprep.subr.mxu0 0.0
    %280 = vmatpush1.msra.mxu0 0.0
    %281 = vmatprep.subr.mxu0 0.0
    %282 = vmatpush1.msra.mxu0 0.0
    %283 = vmatprep.subr.mxu0 0.0
    %284 = vmatpush1.msra.mxu0 0.0
    %285 = vmatprep.subr.mxu0 0.0
    %286 = vmatpush1.msra.mxu0 0.0
    %287 = vmatprep.subr.mxu0 0.0
    %288 = vmatpush1.msra.mxu0 0.0
    %289 = vmatprep.subr.mxu0 0.0
    %290 = vmatpush1.msra.mxu0 0.0
    %291 = vmatprep.mubr.f32.mxu0 0.0
    %292 = vmatmul.mubr.f32.gmra.mrb[0].mxu0 %v202
    %v293 = vpop.f32.mrb[0].mxu0
    %v294 = vadd.f32 %v225, %v293
    %v295 = vpop.f32.mrb[0].mxu0
    %296 = vmatprep.mubr.f32.mxu0 0.0
    %297 = vmatmul.mubr.f32.gmra.mrb[0].mxu0 %v203
    %v298 = vpop.f32.mrb[0].mxu0
    %v299 = vadd.f32 %v225, %v298
    %v300 = vpop.f32.mrb[0].mxu0
    %301 = vdwg.mxu0
    %v302 = vmax.f32 %v294, 0.0
    %v303 = vmax.f32 %v299, 0.0
    %v304 = vld [vmem:[#allocation9] sm:$0xff]
    %v305 = vld [vmem:[#allocation9 + $0x8] sm:$0xff]
    %v306 = vld [vmem:[#allocation9 + $0x10] sm:$0xff]
    %v307 = vld [vmem:[#allocation9 + $0x18] sm:$0xff]
    %v308 = vld [vmem:[#allocation9 + $0x20] sm:$0xff]
    %v309 = vld [vmem:[#allocation9 + $0x28] sm:$0xff]
    %v310 = vld [vmem:[#allocation9 + $0x30] sm:$0xff]
    %v311 = vld [vmem:[#allocation9 + $0x38] sm:$0xff]
    %v312 = vld [vmem:[#allocation9 + $0x40] sm:$0xff]
    %v313 = vld [vmem:[#allocation9 + $0x48] sm:$0xff]
    %v314 = vld [vmem:[#allocation9 + $0x50] sm:$0xff]
    %v315 = vld [vmem:[#allocation9 + $0x58] sm:$0xff]
    %v316 = vld [vmem:[#allocation9 + $0x60] sm:$0xff]
    %v317 = vld [vmem:[#allocation9 + $0x68] sm:$0xff]
    %v318 = vld [vmem:[#allocation9 + $0x70] sm:$0xff]
    %v319 = vld [vmem:[#allocation9 + $0x78] sm:$0xff]
    %v320 = vld [vmem:[#allocation9 + $0x80] sm:$0xff]
    %v321 = vld [vmem:[#allocation9 + $0x88] sm:$0xff]
    %v322 = vld [vmem:[#allocation9 + $0x90] sm:$0xff]
    %v323 = vld [vmem:[#allocation9 + $0x98] sm:$0xff]
    %v324 = vld [vmem:[#allocation9 + $0xa0] sm:$0xff]
    %v325 = vld [vmem:[#allocation9 + $0xa8] sm:$0xff]
    %v326 = vld [vmem:[#allocation9 + $0xb0] sm:$0xff]
    %v327 = vld [vmem:[#allocation9 + $0xb8] sm:$0xff]
    %v328 = vld [vmem:[#allocation9 + $0xc0] sm:$0xff]
    %v329 = vld [vmem:[#allocation9 + $0xc8] sm:$0xff]
    %v330 = vld [vmem:[#allocation9 + $0xd0] sm:$0xff]
    %v331 = vld [vmem:[#allocation9 + $0xd8] sm:$0xff]
    %v332 = vld [vmem:[#allocation9 + $0xe0] sm:$0xff]
    %v333 = vld [vmem:[#allocation9 + $0xe8] sm:$0xff]
    %v334 = vld [vmem:[#allocation9 + $0xf0] sm:$0xff]
    %v335 = vld [vmem:[#allocation9 + $0xf8] sm:$0xff]
    %v336 = vld [vmem:[%s6] sm:$0x3]
    %v338 = vlaneseq
    %v339 = vshrl.u32 %v338, 7
    %v340 = vsub.s32 0, %v339
    %v341 = vrot.slane %v336, %v340
    %v342 = vlaneseq
    %v343 = vshrl.u32 %v342, 7
    %v344 = vsub.s32 1, %v343
    %v345 = vrot.slane %v336, %v344
    %348 = vmatprep.subr.mxu0 %v305
    %349 = vmatpush1.msra.mxu0 %v304
    %350 = vmatprep.subr.mxu0 %v307
    %351 = vmatpush1.msra.mxu0 %v306
    %352 = vmatprep.subr.mxu0 %v309
    %353 = vmatpush1.msra.mxu0 %v308
    %354 = vmatprep.subr.mxu0 %v311
    %355 = vmatpush1.msra.mxu0 %v310
    %356 = vmatprep.subr.mxu0 %v313
    %357 = vmatpush1.msra.mxu0 %v312
    %358 = vmatprep.subr.mxu0 %v315
    %359 = vmatpush1.msra.mxu0 %v314
    %360 = vmatprep.subr.mxu0 %v317
    %361 = vmatpush1.msra.mxu0 %v316
    %362 = vmatprep.subr.mxu0 %v319
    %363 = vmatpush1.msra.mxu0 %v318
    %364 = vmatprep.subr.mxu0 %v321
    %365 = vmatpush1.msra.mxu0 %v320
    %366 = vmatprep.subr.mxu0 %v323
    %367 = vmatpush1.msra.mxu0 %v322
    %368 = vmatprep.subr.mxu0 %v325
    %369 = vmatpush1.msra.mxu0 %v324
    %370 = vmatprep.subr.mxu0 %v327
    %371 = vmatpush1.msra.mxu0 %v326
    %372 = vmatprep.subr.mxu0 %v329
    %373 = vmatpush1.msra.mxu0 %v328
    %374 = vmatprep.subr.mxu0 %v331
    %375 = vmatpush1.msra.mxu0 %v330
    %376 = vmatprep.subr.mxu0 %v333
    %377 = vmatpush1.msra.mxu0 %v332
    %378 = vmatprep.subr.mxu0 %v335
    %379 = vmatpush1.msra.mxu0 %v334
    %380 = vmatprep.subr.mxu0 0.0
    %381 = vmatpush1.msra.mxu0 0.0
    %382 = vmatprep.subr.mxu0 0.0
    %383 = vmatpush1.msra.mxu0 0.0
    %384 = vmatprep.subr.mxu0 0.0
    %385 = vmatpush1.msra.mxu0 0.0
    %386 = vmatprep.subr.mxu0 0.0
    %387 = vmatpush1.msra.mxu0 0.0
    %388 = vmatprep.subr.mxu0 0.0
    %389 = vmatpush1.msra.mxu0 0.0
    %390 = vmatprep.subr.mxu0 0.0
    %391 = vmatpush1.msra.mxu0 0.0
    %392 = vmatprep.subr.mxu0 0.0
    %393 = vmatpush1.msra.mxu0 0.0
    %394 = vmatprep.subr.mxu0 0.0
    %395 = vmatpush1.msra.mxu0 0.0
    %396 = vmatprep.subr.mxu0 0.0
    %397 = vmatpush1.msra.mxu0 0.0
    %398 = vmatprep.subr.mxu0 0.0
    %399 = vmatpush1.msra.mxu0 0.0
    %400 = vmatprep.subr.mxu0 0.0
    %401 = vmatpush1.msra.mxu0 0.0
    %402 = vmatprep.subr.mxu0 0.0
    %403 = vmatpush1.msra.mxu0 0.0
    %404 = vmatprep.subr.mxu0 0.0
    %405 = vmatpush1.msra.mxu0 0.0
    %406 = vmatprep.subr.mxu0 0.0
    %407 = vmatpush1.msra.mxu0 0.0
    %408 = vmatprep.subr.mxu0 0.0
    %409 = vmatpush1.msra.mxu0 0.0
    %410 = vmatprep.subr.mxu0 0.0
    %411 = vmatpush1.msra.mxu0 0.0
    %412 = vmatprep.mubr.f32.mxu0 0.0
    %413 = vmatmul.mubr.f32.gmra.mrb[0].mxu0 %v302
    %v414 = vpop.f32.mrb[0].mxu0
    %v415 = vadd.f32 %v341, %v414
    %v416 = vpop.f32.mrb[0].mxu0
    %v417 = vadd.f32 %v345, %v416
    %418 = vmatprep.mubr.f32.mxu0 0.0
    %419 = vmatmul.mubr.f32.gmra.mrb[0].mxu0 %v303
    %v420 = vpop.f32.mrb[0].mxu0
    %v421 = vadd.f32 %v341, %v420
    %v422 = vpop.f32.mrb[0].mxu0
    %v423 = vadd.f32 %v345, %v422
    %424 = vdwg.mxu0
    %v425 = vmax.f32 %v415, 0.0
    %v426 = vmax.f32 %v421, 0.0
    %v427 = vadd.f32 %v302, %v425
    %v428 = vadd.f32 %v303, %v426
    %v429 = vadd.f32 %v302, %v417
    %v430 = vadd.f32 %v303, %v423
    %v431 = vld [vmem:[%s9] sm:$0x1]
    %v433 = vlaneseq
    %v434 = vshrl.u32 %v433, 7
    %v435 = vsub.s32 0, %v434
    %v436 = vrot.slane %v431, %v435
    %v438 = vmul.f32 %v427, %v436
    %v439 = vmul.f32 %v428, %v436
    %440 = vadd.xlane.f32.xlu0 %v438
    %v441 = vpop.xlane.xlu0 %440
    %442 = vadd.xlane.f32.xlu0 %v439
    %v443 = vpop.xlane.xlu0 %442
    %v444 = vld [vmem:[#allocation2] sm:$0x1]
    %v446 = vlaneseq
    %v447 = vshrl.u32 %v446, 7
    %v448 = vsub.s32 0, %v447
    %v449 = vrot.slane %v444, %v448
    %v451 = vadd.f32 %v441, %v449
    %v452 = vadd.f32 %v443, %v449
    %v453 = vld [vmem:[#allocation11] sm:$0xff]
    %v454 = vld [vmem:[#allocation11 + $0x8] sm:$0xff]
    %v455 = vld [vmem:[#allocation11 + $0x10] sm:$0xff]
    %v456 = vld [vmem:[#allocation11 + $0x18] sm:$0xff]
    %v457 = vld [vmem:[#allocation11 + $0x20] sm:$0xff]
    %v458 = vld [vmem:[#allocation11 + $0x28] sm:$0xff]
    %v459 = vld [vmem:[#allocation11 + $0x30] sm:$0xff]
    %v460 = vld [vmem:[#allocation11 + $0x38] sm:$0xff]
    %v461 = vld [vmem:[#allocation11 + $0x40] sm:$0xff]
    %v462 = vld [vmem:[#allocation11 + $0x48] sm:$0xff]
    %v463 = vld [vmem:[#allocation11 + $0x50] sm:$0xff]
    %v464 = vld [vmem:[#allocation11 + $0x58] sm:$0xff]
    %v465 = vld [vmem:[#allocation11 + $0x60] sm:$0xff]
    %v466 = vld [vmem:[#allocation11 + $0x68] sm:$0xff]
    %v467 = vld [vmem:[#allocation11 + $0x70] sm:$0xff]
    %v468 = vld [vmem:[#allocation11 + $0x78] sm:$0xff]
    %v469 = vld [vmem:[%s8] sm:$0x1]
    %v471 = vlaneseq
    %v472 = vshrl.u32 %v471, 7
    %v473 = vsub.s32 0, %v472
    %v474 = vrot.slane %v469, %v473
    %476 = vmatprep.subr.mxu0 0.0
    %477 = vmatpush1.msra.mxu0 %v453
    %478 = vmatprep.subr.mxu0 0.0
    %479 = vmatpush1.msra.mxu0 %v454
    %480 = vmatprep.subr.mxu0 0.0
    %481 = vmatpush1.msra.mxu0 %v455
    %482 = vmatprep.subr.mxu0 0.0
    %483 = vmatpush1.msra.mxu0 %v456
    %484 = vmatprep.subr.mxu0 0.0
    %485 = vmatpush1.msra.mxu0 %v457
    %486 = vmatprep.subr.mxu0 0.0
    %487 = vmatpush1.msra.mxu0 %v458
    %488 = vmatprep.subr.mxu0 0.0
    %489 = vmatpush1.msra.mxu0 %v459
    %490 = vmatprep.subr.mxu0 0.0
    %491 = vmatpush1.msra.mxu0 %v460
    %492 = vmatprep.subr.mxu0 0.0
    %493 = vmatpush1.msra.mxu0 %v461
    %494 = vmatprep.subr.mxu0 0.0
    %495 = vmatpush1.msra.mxu0 %v462
    %496 = vmatprep.subr.mxu0 0.0
    %497 = vmatpush1.msra.mxu0 %v463
    %498 = vmatprep.subr.mxu0 0.0
    %499 = vmatpush1.msra.mxu0 %v464
    %500 = vmatprep.subr.mxu0 0.0
    %501 = vmatpush1.msra.mxu0 %v465
    %502 = vmatprep.subr.mxu0 0.0
    %503 = vmatpush1.msra.mxu0 %v466
    %504 = vmatprep.subr.mxu0 0.0
    %505 = vmatpush1.msra.mxu0 %v467
    %506 = vmatprep.subr.mxu0 0.0
    %507 = vmatpush1.msra.mxu0 %v468
    %508 = vmatprep.subr.mxu0 0.0
    %509 = vmatpush1.msra.mxu0 0.0
    %510 = vmatprep.subr.mxu0 0.0
    %511 = vmatpush1.msra.mxu0 0.0
    %512 = vmatprep.subr.mxu0 0.0
    %513 = vmatpush1.msra.mxu0 0.0
    %514 = vmatprep.subr.mxu0 0.0
    %515 = vmatpush1.msra.mxu0 0.0
    %516 = vmatprep.subr.mxu0 0.0
    %517 = vmatpush1.msra.mxu0 0.0
    %518 = vmatprep.subr.mxu0 0.0
    %519 = vmatpush1.msra.mxu0 0.0
    %520 = vmatprep.subr.mxu0 0.0
    %521 = vmatpush1.msra.mxu0 0.0
    %522 = vmatprep.subr.mxu0 0.0
    %523 = vmatpush1.msra.mxu0 0.0
    %524 = vmatprep.subr.mxu0 0.0
    %525 = vmatpush1.msra.mxu0 0.0
    %526 = vmatprep.subr.mxu0 0.0
    %527 = vmatpush1.msra.mxu0 0.0
    %528 = vmatprep.subr.mxu0 0.0
    %529 = vmatpush1.msra.mxu0 0.0
    %530 = vmatprep.subr.mxu0 0.0
    %531 = vmatpush1.msra.mxu0 0.0
    %532 = vmatprep.subr.mxu0 0.0
    %533 = vmatpush1.msra.mxu0 0.0
    %534 = vmatprep.subr.mxu0 0.0
    %535 = vmatpush1.msra.mxu0 0.0
    %536 = vmatprep.subr.mxu0 0.0
    %537 = vmatpush1.msra.mxu0 0.0
    %538 = vmatprep.subr.mxu0 0.0
    %539 = vmatpush1.msra.mxu0 0.0
    %540 = vmatprep.mubr.f32.mxu0 0.0
    %541 = vmatmul.mubr.f32.gmra.mrb[0].mxu0 %v429
    %v542 = vpop.f32.mrb[0].mxu0
    %v543 = vadd.f32 %v474, %v542
    %v544 = vpop.f32.mrb[0].mxu0
    %545 = vmatprep.mubr.f32.mxu0 0.0
    %546 = vmatmul.mubr.f32.gmra.mrb[0].mxu0 %v430
    %v547 = vpop.f32.mrb[0].mxu0
    %v548 = vadd.f32 %v474, %v547
    %v549 = vpop.f32.mrb[0].mxu0
    %550 = vdwg.mxu0
    %v551 = vlaneseq
    %v552 = vand.u32 %v551, 127
    %vm553 = vcmp.eq.s32.totalorder %v552, 127
    %555 = vset.pattern.permute.xlu0 0
    %556 = vperm.xlu0 %555, %v451
    %v557 = vpop.permute.xlu0 %556
    %560 = vset.pattern.permute.xlu0 0
    %561 = vperm.xlu0 %560, %v452
    %v562 = vpop.permute.xlu0 %561
    %v564 = vsel %vm553, %v557, %v543
    %v565 = vsel %vm553, %v562, %v548
    %566 = vst [vmem:[#allocation12] sm:$0xff] %v564
    %567 = vst [vmem:[#allocation12 + $0x10] sm:$0xff] %v565
    %568 = vst [vmem:[#allocation12 + $0x8] sm:$0xff] %v429
    %569 = vst [vmem:[#allocation12 + $0x18] sm:$0xff] %v430
    // Predicated region
    $region66: #{tpu_custom_call.1} parent=1 // pred_check
      _
    $region67: #{tpu_custom_call.1} parent=1 // pred_check_branch
      %571 = sbr.rel (0) target = $region69
    $region68: #{tpu_custom_call.1} parent=1 // pred_region
      %s573 = ssub.s32 512, 512
      %574 = vsyncadd [#allocation5], %s573
      %s575 = sshll.u32 [#allocation12], 4
      %s576 = int_to_ptr.vmem [resolvable:$true] %s575
      %581 = dma.vmem_to_hbm [thread:$0]  %s576, 512, %s11, [#allocation5], 256, 256, 16
    $region69: #{tpu_custom_call.1} parent=1 // pred_fallthru
      _
    // Predicated region
    $region70: #{tpu_custom_call.1} parent=1 // pred_check
      _
    $region71: #{tpu_custom_call.1} parent=1 // pred_check_branch
      %583 = sbr.rel (0) target = $region73
    $region72: #{tpu_custom_call.1} parent=1 // pred_region
      %584 = dma.done [#allocation5], 512
    $region73: #{tpu_custom_call.1} parent=1 // pred_fallthru
      _
    %585 = vsyncpa [#allocation4], 1
    %586 = vsyncpa [#allocation7], 1
    %587 = vsyncpa [#allocation10], 1
    %588 = vsyncpa [#allocation5], 1

// kernel: tpu_custom_call.1
$region0: #{tpu_custom_call.1}
  #allocation0 [shape = 'u32[]', space=smem, size = 0x4, offset = 0x4, fixed_abs, tag = 'smem constant byte address 0x4 - core index']
  #allocation1 [shape = 'u32[144,128]{1,0:T(1,128)}', space=vmem, size = 0x12000, scoped, tag = 'internal scratch']
  #allocation2 [shape = 'f32[1,1]{1,0:T(1,128)S(1)}', space=vmem, size = 0x200, scoped, tag = 'scoped memory for tpu_custom_call.1']
  %s0 = inlined_call_operand.hbm [shape: f32[16,16], index: 0, kind: input, shape index: {}]
  %s1 = inlined_call_operand.hbm [shape: f32[16,128], index: 1, kind: input, shape index: {}]
  %s2 = inlined_call_operand.vmem [shape: f32[1,128], index: 2, kind: input, shape index: {}]
  %s3 = inlined_call_operand.hbm [shape: f32[128,128], index: 3, kind: input, shape index: {}]
  %s4 = inlined_call_operand.vmem [shape: f32[1,128], index: 4, kind: input, shape index: {}]
  %s5 = inlined_call_operand.hbm [shape: f32[128,256], index: 5, kind: input, shape index: {}]
  %s6 = inlined_call_operand.vmem [shape: f32[1,256], index: 6, kind: input, shape index: {}]
  %s7 = inlined_call_operand.hbm [shape: f32[128,128], index: 7, kind: input, shape index: {}]
  %s8 = inlined_call_operand.vmem [shape: f32[1,128], index: 8, kind: input, shape index: {}]
  %s9 = inlined_call_operand.vmem [shape: f32[1,128], index: 9, kind: input, shape index: {}]
  %s10 = inlined_call_operand.<no memory space> [shape: f32[1,1], index: 10, kind: input, shape index: {}]
  %s11 = inlined_call_operand.hbm [shape: f32[16,256], index: 11, kind: output, shape index: {}]
  %s12 = sld [smem:[#allocation0]]
  $region74: #{tpu_custom_call.1} parent=0
    _
  %s14 = ssub.s32 1, %s12
  %s15 = scalar_select 0, %s14, %s12
  %v16 = vstv %s10
  %17 = vst [vmem:[#allocation2] sm:$0x1] %v16
  $region1: #{tpu_custom_call.1} parent=0
    #allocation3 [shape = 'u8[8192]{0}', space=vmem, size = 0x2000, scoped, tag = 'input window, operand 0, single buffered']
    #allocation4 [shape = 's32[1]{0}', space=sflag, size = 0x4, scoped, tag = 'scoped memory for tpu_custom_call.1']
    #allocation5 [shape = 's32[1]{0}', space=sflag, size = 0x4, scoped, tag = 'scoped memory for tpu_custom_call.1']
    #allocation6 [shape = 'u8[8192]{0}', space=vmem, size = 0x2000, scoped, tag = 'input window, operand 1, single buffered']
    #allocation7 [shape = 's32[1]{0}', space=sflag, size = 0x4, scoped, tag = 'scoped memory for tpu_custom_call.1']
    #allocation8 [shape = 'u8[65536]{0}', space=vmem, size = 0x10000, scoped, tag = 'input window, operand 3, single buffered']
    #allocation9 [shape = 'u8[131072]{0}', space=vmem, size = 0x20000, scoped, tag = 'input window, operand 5, single buffered']
    #allocation10 [shape = 's32[1]{0}', space=sflag, size = 0x4, scoped, tag = 'scoped memory for tpu_custom_call.1']
    #allocation11 [shape = 'u8[65536]{0}', space=vmem, size = 0x10000, scoped, tag = 'input window, operand 7, single buffered']
    #allocation12 [shape = 'u8[16384]{0}', space=vmem, size = 0x4000, scoped, tag = 'output window, operand 0, single buffered']
    %18 = vsyncpa [#allocation4], 0
    %19 = vsyncpa [#allocation7], 0
    %20 = vsyncpa [#allocation10], 0
    %21 = vsyncpa [#allocation5], 0
    // Predicated region
    $region2: #{tpu_custom_call.1} parent=1 // pred_check
      _
    $region3: #{tpu_custom_call.1} parent=1 // pred_check_branch
      %23 = sbr.rel (0) target = $region5
    $region4: #{tpu_custom_call.1} parent=1 // pred_region
      %s25 = ssub.s32 256, 256
      %26 = vsyncadd [#allocation4], %s25
      %s27 = sshll.u32 [#allocation3], 4
      %s28 = int_to_ptr.vmem [resolvable:$true] %s27
      %33 = dma.hbm_to_vmem [thread:$0]  %s0, 256, %s28, [#allocation4], 128, 128, 8
    $region5: #{tpu_custom_call.1} parent=1 // pred_fallthru
      _
    // Predicated region
    $region6: #{tpu_custom_call.1} parent=1 // pred_check
      _
    $region7: #{tpu_custom_call.1} parent=1 // pred_check_branch
      %35 = sbr.rel (0) target = $region9
    $region8: #{tpu_custom_call.1} parent=1 // pred_region
      %s37 = ssub.s32 256, 256
      %38 = vsyncadd [#allocation7], %s37
      %s39 = sshll.u32 [#allocation6], 4
      %s40 = int_to_ptr.vmem [resolvable:$true] %s39
      %45 = dma.hbm_to_vmem [thread:$0]  %s1, 256, %s40, [#allocation7], 128, 128, 8
    $region9: #{tpu_custom_call.1} parent=1 // pred_fallthru
      _
    // Predicated region
    $region10: #{tpu_custom_call.1} parent=1 // pred_check
      _
    $region11: #{tpu_custom_call.1} parent=1 // pred_check_branch
      %47 = sbr.rel (0) target = $region13
    $region12: #{tpu_custom_call.1} parent=1 // pred_region
      _
    $region13: #{tpu_custom_call.1} parent=1 // pred_fallthru
      _
    // Predicated region
    $region14: #{tpu_custom_call.1} parent=1 // pred_check
      _
    $region15: #{tpu_custom_call.1} parent=1 // pred_check_branch
      %49 = sbr.rel (0) target = $region17
    $region16: #{tpu_custom_call.1} parent=1 // pred_region
      %s51 = ssub.s32 2048, 2048
      %52 = vsyncadd [#allocation7], %s51
      %s53 = sshll.u32 [#allocation8], 4
      %s54 = int_to_ptr.vmem [resolvable:$true] %s53
      %59 = dma.hbm_to_vmem [thread:$0]  %s3, 2048, %s54, [#allocation7], 128, 128, 8
    $region17: #{tpu_custom_call.1} parent=1 // pred_fallthru
      _
    // Predicated region
    $region18: #{tpu_custom_call.1} parent=1 // pred_check
      _
    $region19: #{tpu_custom_call.1} parent=1 // pred_check_branch
      %61 = sbr.rel (0) target = $region21
    $region20: #{tpu_custom_call.1} parent=1 // pred_region
      _
    $region21: #{tpu_custom_call.1} parent=1 // pred_fallthru
      _
    // Predicated region
    $region22: #{tpu_custom_call.1} parent=1 // pred_check
      _
    $region23: #{tpu_custom_call.1} parent=1 // pred_check_branch
      %63 = sbr.rel (0) target = $region25
    $region24: #{tpu_custom_call.1} parent=1 // pred_region
      %s65 = ssub.s32 4096, 4096
      %66 = vsyncadd [#allocation10], %s65
      %s67 = sshll.u32 [#allocation9], 4
      %s68 = int_to_ptr.vmem [resolvable:$true] %s67
      %73 = dma.hbm_to_vmem [thread:$0]  %s5, 4096, %s68, [#allocation10], 256, 256, 16
    $region25: #{tpu_custom_call.1} parent=1 // pred_fallthru
      _
    // Predicated region
    $region26: #{tpu_custom_call.1} parent=1 // pred_check
      _
    $region27: #{tpu_custom_call.1} parent=1 // pred_check_branch
      %75 = sbr.rel (0) target = $region29
    $region28: #{tpu_custom_call.1} parent=1 // pred_region
      _
    $region29: #{tpu_custom_call.1} parent=1 // pred_fallthru
      _
    // Predicated region
    $region30: #{tpu_custom_call.1} parent=1 // pred_check
      _
    $region31: #{tpu_custom_call.1} parent=1 // pred_check_branch
      %77 = sbr.rel (0) target = $region33
    $region32: #{tpu_custom_call.1} parent=1 // pred_region
      %s79 = ssub.s32 2048, 2048
      %80 = vsyncadd [#allocation10], %s79
      %s81 = sshll.u32 [#allocation11], 4
      %s82 = int_to_ptr.vmem [resolvable:$true] %s81
      %87 = dma.hbm_to_vmem [thread:$0]  %s7, 2048, %s82, [#allocation10], 128, 128, 8
    $region33: #{tpu_custom_call.1} parent=1 // pred_fallthru
      _
    // Predicated region
    $region34: #{tpu_custom_call.1} parent=1 // pred_check
      _
    $region35: #{tpu_custom_call.1} parent=1 // pred_check_branch
      %89 = sbr.rel (0) target = $region37
    $region36: #{tpu_custom_call.1} parent=1 // pred_region
      _
    $region37: #{tpu_custom_call.1} parent=1 // pred_fallthru
      _
    // Predicated region
    $region38: #{tpu_custom_call.1} parent=1 // pred_check
      _
    $region39: #{tpu_custom_call.1} parent=1 // pred_check_branch
      %91 = sbr.rel (0) target = $region41
    $region40: #{tpu_custom_call.1} parent=1 // pred_region
      _
    $region41: #{tpu_custom_call.1} parent=1 // pred_fallthru
      _
    // Predicated region
    $region42: #{tpu_custom_call.1} parent=1 // pred_check
      _
    $region43: #{tpu_custom_call.1} parent=1 // pred_check_branch
      %93 = sbr.rel (0) target = $region45
    $region44: #{tpu_custom_call.1} parent=1 // pred_region
      _
    $region45: #{tpu_custom_call.1} parent=1 // pred_fallthru
      _
    // Predicated region
    $region46: #{tpu_custom_call.1} parent=1 // pred_check
      _
    $region47: #{tpu_custom_call.1} parent=1 // pred_check_branch
      %95 = sbr.rel (0) target = $region49
    $region48: #{tpu_custom_call.1} parent=1 // pred_region
      %96 = dma.done [#allocation4], 256
    $region49: #{tpu_custom_call.1} parent=1 // pred_fallthru
      _
    // Predicated region
    $region50: #{tpu_custom_call.1} parent=1 // pred_check
      _
    $region51: #{tpu_custom_call.1} parent=1 // pred_check_branch
      %98 = sbr.rel (0) target = $region53
    $region52: #{tpu_custom_call.1} parent=1 // pred_region
      %99 = dma.done [#allocation7], 256
    $region53: #{tpu_custom_call.1} parent=1 // pred_fallthru
      _
    // Predicated region
    $region54: #{tpu_custom_call.1} parent=1 // pred_check
      _
    $region55: #{tpu_custom_call.1} parent=1 // pred_check_branch
      %101 = sbr.rel (0) target = $region57
    $region56: #{tpu_custom_call.1} parent=1 // pred_region
      %102 = dma.done [#allocation7], 2048
    $region57: #{tpu_custom_call.1} parent=1 // pred_fallthru
      _
    // Predicated region
    $region58: #{tpu_custom_call.1} parent=1 // pred_check
      _
    $region59: #{tpu_custom_call.1} parent=1 // pred_check_branch
      %104 = sbr.rel (0) target = $region61
    $region60: #{tpu_custom_call.1} parent=1 // pred_region
      %105 = dma.done [#allocation10], 4096
    $region61: #{tpu_custom_call.1} parent=1 // pred_fallthru
      _
    // Predicated region
    $region62: #{tpu_custom_call.1} parent=1 // pred_check
      _
    $region63: #{tpu_custom_call.1} parent=1 // pred_check_branch
      %107 = sbr.rel (0) target = $region65
    $region64: #{tpu_custom_call.1} parent=1 // pred_region
      %108 = dma.done [#allocation10], 2048
    $region65: #{tpu_custom_call.1} parent=1 // pred_fallthru
      _
    %v109 = vld [vmem:[#allocation3] sm:$0xff]
    %v110 = vld [vmem:[#allocation3 + $0x8] sm:$0xff]
    %v111 = vld [vmem:[#allocation6] sm:$0xff]
    %v112 = vld [vmem:[#allocation6 + $0x8] sm:$0xff]
    %v113 = vld [vmem:[%s2] sm:$0x1]
    %v115 = vlaneseq
    %v116 = vshrl.u32 %v115, 7
    %v117 = vsub.s32 0, %v116
    %v118 = vrot.slane %v113, %v117
    %vm120 = vcmask 130048
    %v122 = vsel %vm120, %v109, 0
    %v125 = vsel %vm120, %v110, 0
    %127 = vmatprep.subr.mxu0 0.0
    %128 = vmatpush1.msra.mxu0 %v111
    %129 = vmatprep.subr.mxu0 0.0
    %130 = vmatpush1.msra.mxu0 %v112
    %131 = vmatprep.subr.mxu0 0.0
    %132 = vmatpush1.msra.mxu0 0.0
    %133 = vmatprep.subr.mxu0 0.0
    %134 = vmatpush1.msra.mxu0 0.0
    %135 = vmatprep.subr.mxu0 0.0
    %136 = vmatpush1.msra.mxu0 0.0
    %137 = vmatprep.subr.mxu0 0.0
    %138 = vmatpush1.msra.mxu0 0.0
    %139 = vmatprep.subr.mxu0 0.0
    %140 = vmatpush1.msra.mxu0 0.0
    %141 = vmatprep.subr.mxu0 0.0
    %142 = vmatpush1.msra.mxu0 0.0
    %143 = vmatprep.subr.mxu0 0.0
    %144 = vmatpush1.msra.mxu0 0.0
    %145 = vmatprep.subr.mxu0 0.0
    %146 = vmatpush1.msra.mxu0 0.0
    %147 = vmatprep.subr.mxu0 0.0
    %148 = vmatpush1.msra.mxu0 0.0
    %149 = vmatprep.subr.mxu0 0.0
    %150 = vmatpush1.msra.mxu0 0.0
    %151 = vmatprep.subr.mxu0 0.0
    %152 = vmatpush1.msra.mxu0 0.0
    %153 = vmatprep.subr.mxu0 0.0
    %154 = vmatpush1.msra.mxu0 0.0
    %155 = vmatprep.subr.mxu0 0.0
    %156 = vmatpush1.msra.mxu0 0.0
    %157 = vmatprep.subr.mxu0 0.0
    %158 = vmatpush1.msra.mxu0 0.0
    %159 = vmatprep.subr.mxu0 0.0
    %160 = vmatpush1.msra.mxu0 0.0
    %161 = vmatprep.subr.mxu0 0.0
    %162 = vmatpush1.msra.mxu0 0.0
    %163 = vmatprep.subr.mxu0 0.0
    %164 = vmatpush1.msra.mxu0 0.0
    %165 = vmatprep.subr.mxu0 0.0
    %166 = vmatpush1.msra.mxu0 0.0
    %167 = vmatprep.subr.mxu0 0.0
    %168 = vmatpush1.msra.mxu0 0.0
    %169 = vmatprep.subr.mxu0 0.0
    %170 = vmatpush1.msra.mxu0 0.0
    %171 = vmatprep.subr.mxu0 0.0
    %172 = vmatpush1.msra.mxu0 0.0
    %173 = vmatprep.subr.mxu0 0.0
    %174 = vmatpush1.msra.mxu0 0.0
    %175 = vmatprep.subr.mxu0 0.0
    %176 = vmatpush1.msra.mxu0 0.0
    %177 = vmatprep.subr.mxu0 0.0
    %178 = vmatpush1.msra.mxu0 0.0
    %179 = vmatprep.subr.mxu0 0.0
    %180 = vmatpush1.msra.mxu0 0.0
    %181 = vmatprep.subr.mxu0 0.0
    %182 = vmatpush1.msra.mxu0 0.0
    %183 = vmatprep.subr.mxu0 0.0
    %184 = vmatpush1.msra.mxu0 0.0
    %185 = vmatprep.subr.mxu0 0.0
    %186 = vmatpush1.msra.mxu0 0.0
    %187 = vmatprep.subr.mxu0 0.0
    %188 = vmatpush1.msra.mxu0 0.0
    %189 = vmatprep.subr.mxu0 0.0
    %190 = vmatpush1.msra.mxu0 0.0
    %191 = vmatprep.mubr.f32.mxu0 0.0
    %192 = vmatmul.mubr.f32.gmra.mrb[0].mxu0 %v122
    %v193 = vpop.f32.mrb[0].mxu0
    %v194 = vadd.f32 %v118, %v193
    %v195 = vpop.f32.mrb[0].mxu0
    %196 = vmatprep.mubr.f32.mxu0 0.0
    %197 = vmatmul.mubr.f32.gmra.mrb[0].mxu0 %v125
    %v198 = vpop.f32.mrb[0].mxu0
    %v199 = vadd.f32 %v118, %v198
    %v200 = vpop.f32.mrb[0].mxu0
    %201 = vdwg.mxu0
    %v202 = vmax.f32 %v194, 0.0
    %v203 = vmax.f32 %v199, 0.0
    %v204 = vld [vmem:[#allocation8] sm:$0xff]
    %v205 = vld [vmem:[#allocation8 + $0x8] sm:$0xff]
    %v206 = vld [vmem:[#allocation8 + $0x10] sm:$0xff]
    %v207 = vld [vmem:[#allocation8 + $0x18] sm:$0xff]
    %v208 = vld [vmem:[#allocation8 + $0x20] sm:$0xff]
    %v209 = vld [vmem:[#allocation8 + $0x28] sm:$0xff]
    %v210 = vld [vmem:[#allocation8 + $0x30] sm:$0xff]
    %v211 = vld [vmem:[#allocation8 + $0x38] sm:$0xff]
    %v212 = vld [vmem:[#allocation8 + $0x40] sm:$0xff]
    %v213 = vld [vmem:[#allocation8 + $0x48] sm:$0xff]
    %v214 = vld [vmem:[#allocation8 + $0x50] sm:$0xff]
    %v215 = vld [vmem:[#allocation8 + $0x58] sm:$0xff]
    %v216 = vld [vmem:[#allocation8 + $0x60] sm:$0xff]
    %v217 = vld [vmem:[#allocation8 + $0x68] sm:$0xff]
    %v218 = vld [vmem:[#allocation8 + $0x70] sm:$0xff]
    %v219 = vld [vmem:[#allocation8 + $0x78] sm:$0xff]
    %v220 = vld [vmem:[%s4] sm:$0x1]
    %v222 = vlaneseq
    %v223 = vshrl.u32 %v222, 7
    %v224 = vsub.s32 0, %v223
    %v225 = vrot.slane %v220, %v224
    %227 = vmatprep.subr.mxu0 0.0
    %228 = vmatpush1.msra.mxu0 %v204
    %229 = vmatprep.subr.mxu0 0.0
    %230 = vmatpush1.msra.mxu0 %v205
    %231 = vmatprep.subr.mxu0 0.0
    %232 = vmatpush1.msra.mxu0 %v206
    %233 = vmatprep.subr.mxu0 0.0
    %234 = vmatpush1.msra.mxu0 %v207
    %235 = vmatprep.subr.mxu0 0.0
    %236 = vmatpush1.msra.mxu0 %v208
    %237 = vmatprep.subr.mxu0 0.0
    %238 = vmatpush1.msra.mxu0 %v209
    %239 = vmatprep.subr.mxu0 0.0
    %240 = vmatpush1.msra.mxu0 %v210
    %241 = vmatprep.subr.mxu0 0.0
    %242 = vmatpush1.msra.mxu0 %v211
    %243 = vmatprep.subr.mxu0 0.0
    %244 = vmatpush1.msra.mxu0 %v212
    %245 = vmatprep.subr.mxu0 0.0
    %246 = vmatpush1.msra.mxu0 %v213
    %247 = vmatprep.subr.mxu0 0.0
    %248 = vmatpush1.msra.mxu0 %v214
    %249 = vmatprep.subr.mxu0 0.0
    %250 = vmatpush1.msra.mxu0 %v215
    %251 = vmatprep.subr.mxu0 0.0
    %252 = vmatpush1.msra.mxu0 %v216
    %253 = vmatprep.subr.mxu0 0.0
    %254 = vmatpush1.msra.mxu0 %v217
    %255 = vmatprep.subr.mxu0 0.0
    %256 = vmatpush1.msra.mxu0 %v218
    %257 = vmatprep.subr.mxu0 0.0
    %258 = vmatpush1.msra.mxu0 %v219
    %259 = vmatprep.subr.mxu0 0.0
    %260 = vmatpush1.msra.mxu0 0.0
    %261 = vmatprep.subr.mxu0 0.0
    %262 = vmatpush1.msra.mxu0 0.0
    %263 = vmatprep.subr.mxu0 0.0
    %264 = vmatpush1.msra.mxu0 0.0
    %265 = vmatprep.subr.mxu0 0.0
    %266 = vmatpush1.msra.mxu0 0.0
    %267 = vmatprep.subr.mxu0 0.0
    %268 = vmatpush1.msra.mxu0 0.0
    %269 = vmatprep.subr.mxu0 0.0
    %270 = vmatpush1.msra.mxu0 0.0
    %271 = vmatprep.subr.mxu0 0.0
    %272 = vmatpush1.msra.mxu0 0.0
    %273 = vmatprep.subr.mxu0 0.0
    %274 = vmatpush1.msra.mxu0 0.0
    %275 = vmatprep.subr.mxu0 0.0
    %276 = vmatpush1.msra.mxu0 0.0
    %277 = vmatprep.subr.mxu0 0.0
    %278 = vmatpush1.msra.mxu0 0.0
    %279 = vmatprep.subr.mxu0 0.0
    %280 = vmatpush1.msra.mxu0 0.0
    %281 = vmatprep.subr.mxu0 0.0
    %282 = vmatpush1.msra.mxu0 0.0
    %283 = vmatprep.subr.mxu0 0.0
    %284 = vmatpush1.msra.mxu0 0.0
    %285 = vmatprep.subr.mxu0 0.0
    %286 = vmatpush1.msra.mxu0 0.0
    %287 = vmatprep.subr.mxu0 0.0
    %288 = vmatpush1.msra.mxu0 0.0
    %289 = vmatprep.subr.mxu0 0.0
    %290 = vmatpush1.msra.mxu0 0.0
    %291 = vmatprep.mubr.f32.mxu0 0.0
    %292 = vmatmul.mubr.f32.gmra.mrb[0].mxu0 %v202
    %v293 = vpop.f32.mrb[0].mxu0
    %v294 = vadd.f32 %v225, %v293
    %v295 = vpop.f32.mrb[0].mxu0
    %296 = vmatprep.mubr.f32.mxu0 0.0
    %297 = vmatmul.mubr.f32.gmra.mrb[0].mxu0 %v203
    %v298 = vpop.f32.mrb[0].mxu0
    %v299 = vadd.f32 %v225, %v298
    %v300 = vpop.f32.mrb[0].mxu0
    %301 = vdwg.mxu0
    %v302 = vmax.f32 %v294, 0.0
    %v303 = vmax.f32 %v299, 0.0
    %v304 = vld [vmem:[#allocation9] sm:$0xff]
    %v305 = vld [vmem:[#allocation9 + $0x8] sm:$0xff]
    %v306 = vld [vmem:[#allocation9 + $0x10] sm:$0xff]
    %v307 = vld [vmem:[#allocation9 + $0x18] sm:$0xff]
    %v308 = vld [vmem:[#allocation9 + $0x20] sm:$0xff]
    %v309 = vld [vmem:[#allocation9 + $0x28] sm:$0xff]
    %v310 = vld [vmem:[#allocation9 + $0x30] sm:$0xff]
    %v311 = vld [vmem:[#allocation9 + $0x38] sm:$0xff]
    %v312 = vld [vmem:[#allocation9 + $0x40] sm:$0xff]
    %v313 = vld [vmem:[#allocation9 + $0x48] sm:$0xff]
    %v314 = vld [vmem:[#allocation9 + $0x50] sm:$0xff]
    %v315 = vld [vmem:[#allocation9 + $0x58] sm:$0xff]
    %v316 = vld [vmem:[#allocation9 + $0x60] sm:$0xff]
    %v317 = vld [vmem:[#allocation9 + $0x68] sm:$0xff]
    %v318 = vld [vmem:[#allocation9 + $0x70] sm:$0xff]
    %v319 = vld [vmem:[#allocation9 + $0x78] sm:$0xff]
    %v320 = vld [vmem:[#allocation9 + $0x80] sm:$0xff]
    %v321 = vld [vmem:[#allocation9 + $0x88] sm:$0xff]
    %v322 = vld [vmem:[#allocation9 + $0x90] sm:$0xff]
    %v323 = vld [vmem:[#allocation9 + $0x98] sm:$0xff]
    %v324 = vld [vmem:[#allocation9 + $0xa0] sm:$0xff]
    %v325 = vld [vmem:[#allocation9 + $0xa8] sm:$0xff]
    %v326 = vld [vmem:[#allocation9 + $0xb0] sm:$0xff]
    %v327 = vld [vmem:[#allocation9 + $0xb8] sm:$0xff]
    %v328 = vld [vmem:[#allocation9 + $0xc0] sm:$0xff]
    %v329 = vld [vmem:[#allocation9 + $0xc8] sm:$0xff]
    %v330 = vld [vmem:[#allocation9 + $0xd0] sm:$0xff]
    %v331 = vld [vmem:[#allocation9 + $0xd8] sm:$0xff]
    %v332 = vld [vmem:[#allocation9 + $0xe0] sm:$0xff]
    %v333 = vld [vmem:[#allocation9 + $0xe8] sm:$0xff]
    %v334 = vld [vmem:[#allocation9 + $0xf0] sm:$0xff]
    %v335 = vld [vmem:[#allocation9 + $0xf8] sm:$0xff]
    %v336 = vld [vmem:[%s6] sm:$0x3]
    %v338 = vlaneseq
    %v339 = vshrl.u32 %v338, 7
    %v340 = vsub.s32 0, %v339
    %v341 = vrot.slane %v336, %v340
    %v342 = vlaneseq
    %v343 = vshrl.u32 %v342, 7
    %v344 = vsub.s32 1, %v343
    %v345 = vrot.slane %v336, %v344
    %348 = vmatprep.subr.mxu0 %v305
    %349 = vmatpush1.msra.mxu0 %v304
    %350 = vmatprep.subr.mxu0 %v307
    %351 = vmatpush1.msra.mxu0 %v306
    %352 = vmatprep.subr.mxu0 %v309
    %353 = vmatpush1.msra.mxu0 %v308
    %354 = vmatprep.subr.mxu0 %v311
    %355 = vmatpush1.msra.mxu0 %v310
    %356 = vmatprep.subr.mxu0 %v313
    %357 = vmatpush1.msra.mxu0 %v312
    %358 = vmatprep.subr.mxu0 %v315
    %359 = vmatpush1.msra.mxu0 %v314
    %360 = vmatprep.subr.mxu0 %v317
    %361 = vmatpush1.msra.mxu0 %v316
    %362 = vmatprep.subr.mxu0 %v319
    %363 = vmatpush1.msra.mxu0 %v318
    %364 = vmatprep.subr.mxu0 %v321
    %365 = vmatpush1.msra.mxu0 %v320
    %366 = vmatprep.subr.mxu0 %v323
    %367 = vmatpush1.msra.mxu0 %v322
    %368 = vmatprep.subr.mxu0 %v325
    %369 = vmatpush1.msra.mxu0 %v324
    %370 = vmatprep.subr.mxu0 %v327
    %371 = vmatpush1.msra.mxu0 %v326
    %372 = vmatprep.subr.mxu0 %v329
    %373 = vmatpush1.msra.mxu0 %v328
    %374 = vmatprep.subr.mxu0 %v331
    %375 = vmatpush1.msra.mxu0 %v330
    %376 = vmatprep.subr.mxu0 %v333
    %377 = vmatpush1.msra.mxu0 %v332
    %378 = vmatprep.subr.mxu0 %v335
    %379 = vmatpush1.msra.mxu0 %v334
    %380 = vmatprep.subr.mxu0 0.0
    %381 = vmatpush1.msra.mxu0 0.0
    %382 = vmatprep.subr.mxu0 0.0
    %383 = vmatpush1.msra.mxu0 0.0
    %384 = vmatprep.subr.mxu0 0.0
    %385 = vmatpush1.msra.mxu0 0.0
    %386 = vmatprep.subr.mxu0 0.0
    %387 = vmatpush1.msra.mxu0 0.0
    %388 = vmatprep.subr.mxu0 0.0
    %389 = vmatpush1.msra.mxu0 0.0
    %390 = vmatprep.subr.mxu0 0.0
    %391 = vmatpush1.msra.mxu0 0.0
    %392 = vmatprep.subr.mxu0 0.0
    %393 = vmatpush1.msra.mxu0 0.0
    %394 = vmatprep.subr.mxu0 0.0
    %395 = vmatpush1.msra.mxu0 0.0
    %396 = vmatprep.subr.mxu0 0.0
    %397 = vmatpush1.msra.mxu0 0.0
    %398 = vmatprep.subr.mxu0 0.0
    %399 = vmatpush1.msra.mxu0 0.0
    %400 = vmatprep.subr.mxu0 0.0
    %401 = vmatpush1.msra.mxu0 0.0
    %402 = vmatprep.subr.mxu0 0.0
    %403 = vmatpush1.msra.mxu0 0.0
    %404 = vmatprep.subr.mxu0 0.0
    %405 = vmatpush1.msra.mxu0 0.0
    %406 = vmatprep.subr.mxu0 0.0
    %407 = vmatpush1.msra.mxu0 0.0
    %408 = vmatprep.subr.mxu0 0.0
    %409 = vmatpush1.msra.mxu0 0.0
    %410 = vmatprep.subr.mxu0 0.0
    %411 = vmatpush1.msra.mxu0 0.0
    %412 = vmatprep.mubr.f32.mxu0 0.0
    %413 = vmatmul.mubr.f32.gmra.mrb[0].mxu0 %v302
    %v414 = vpop.f32.mrb[0].mxu0
    %v415 = vadd.f32 %v341, %v414
    %v416 = vpop.f32.mrb[0].mxu0
    %v417 = vadd.f32 %v345, %v416
    %418 = vmatprep.mubr.f32.mxu0 0.0
    %419 = vmatmul.mubr.f32.gmra.mrb[0].mxu0 %v303
    %v420 = vpop.f32.mrb[0].mxu0
    %v421 = vadd.f32 %v341, %v420
    %v422 = vpop.f32.mrb[0].mxu0
    %v423 = vadd.f32 %v345, %v422
    %424 = vdwg.mxu0
    %v425 = vmax.f32 %v415, 0.0
    %v426 = vmax.f32 %v421, 0.0
    %v427 = vadd.f32 %v302, %v425
    %v428 = vadd.f32 %v303, %v426
    %v429 = vadd.f32 %v302, %v417
    %v430 = vadd.f32 %v303, %v423
    %v431 = vld [vmem:[%s9] sm:$0x1]
    %v433 = vlaneseq
    %v434 = vshrl.u32 %v433, 7
    %v435 = vsub.s32 0, %v434
    %v436 = vrot.slane %v431, %v435
    %v438 = vmul.f32 %v427, %v436
    %v439 = vmul.f32 %v428, %v436
    %440 = vadd.xlane.f32.xlu0 %v438
    %v441 = vpop.xlane.xlu0 %440
    %442 = vadd.xlane.f32.xlu0 %v439
    %v443 = vpop.xlane.xlu0 %442
    %v444 = vld [vmem:[#allocation2] sm:$0x1]
    %v446 = vlaneseq
    %v447 = vshrl.u32 %v446, 7
    %v448 = vsub.s32 0, %v447
    %v449 = vrot.slane %v444, %v448
    %v451 = vadd.f32 %v441, %v449
    %v452 = vadd.f32 %v443, %v449
    %v453 = vld [vmem:[#allocation11] sm:$0xff]
    %v454 = vld [vmem:[#allocation11 + $0x8] sm:$0xff]
    %v455 = vld [vmem:[#allocation11 + $0x10] sm:$0xff]
    %v456 = vld [vmem:[#allocation11 + $0x18] sm:$0xff]
    %v457 = vld [vmem:[#allocation11 + $0x20] sm:$0xff]
    %v458 = vld [vmem:[#allocation11 + $0x28] sm:$0xff]
    %v459 = vld [vmem:[#allocation11 + $0x30] sm:$0xff]
    %v460 = vld [vmem:[#allocation11 + $0x38] sm:$0xff]
    %v461 = vld [vmem:[#allocation11 + $0x40] sm:$0xff]
    %v462 = vld [vmem:[#allocation11 + $0x48] sm:$0xff]
    %v463 = vld [vmem:[#allocation11 + $0x50] sm:$0xff]
    %v464 = vld [vmem:[#allocation11 + $0x58] sm:$0xff]
    %v465 = vld [vmem:[#allocation11 + $0x60] sm:$0xff]
    %v466 = vld [vmem:[#allocation11 + $0x68] sm:$0xff]
    %v467 = vld [vmem:[#allocation11 + $0x70] sm:$0xff]
    %v468 = vld [vmem:[#allocation11 + $0x78] sm:$0xff]
    %v469 = vld [vmem:[%s8] sm:$0x1]
    %v471 = vlaneseq
    %v472 = vshrl.u32 %v471, 7
    %v473 = vsub.s32 0, %v472
    %v474 = vrot.slane %v469, %v473
    %476 = vmatprep.subr.mxu0 0.0
    %477 = vmatpush1.msra.mxu0 %v453
    %478 = vmatprep.subr.mxu0 0.0
    %479 = vmatpush1.msra.mxu0 %v454
    %480 = vmatprep.subr.mxu0 0.0
    %481 = vmatpush1.msra.mxu0 %v455
    %482 = vmatprep.subr.mxu0 0.0
    %483 = vmatpush1.msra.mxu0 %v456
    %484 = vmatprep.subr.mxu0 0.0
    %485 = vmatpush1.msra.mxu0 %v457
    %486 = vmatprep.subr.mxu0 0.0
    %487 = vmatpush1.msra.mxu0 %v458
    %488 = vmatprep.subr.mxu0 0.0
    %489 = vmatpush1.msra.mxu0 %v459
    %490 = vmatprep.subr.mxu0 0.0
    %491 = vmatpush1.msra.mxu0 %v460
    %492 = vmatprep.subr.mxu0 0.0
    %493 = vmatpush1.msra.mxu0 %v461
    %494 = vmatprep.subr.mxu0 0.0
    %495 = vmatpush1.msra.mxu0 %v462
    %496 = vmatprep.subr.mxu0 0.0
    %497 = vmatpush1.msra.mxu0 %v463
    %498 = vmatprep.subr.mxu0 0.0
    %499 = vmatpush1.msra.mxu0 %v464
    %500 = vmatprep.subr.mxu0 0.0
    %501 = vmatpush1.msra.mxu0 %v465
    %502 = vmatprep.subr.mxu0 0.0
    %503 = vmatpush1.msra.mxu0 %v466
    %504 = vmatprep.subr.mxu0 0.0
    %505 = vmatpush1.msra.mxu0 %v467
    %506 = vmatprep.subr.mxu0 0.0
    %507 = vmatpush1.msra.mxu0 %v468
    %508 = vmatprep.subr.mxu0 0.0
    %509 = vmatpush1.msra.mxu0 0.0
    %510 = vmatprep.subr.mxu0 0.0
    %511 = vmatpush1.msra.mxu0 0.0
    %512 = vmatprep.subr.mxu0 0.0
    %513 = vmatpush1.msra.mxu0 0.0
    %514 = vmatprep.subr.mxu0 0.0
    %515 = vmatpush1.msra.mxu0 0.0
    %516 = vmatprep.subr.mxu0 0.0
    %517 = vmatpush1.msra.mxu0 0.0
    %518 = vmatprep.subr.mxu0 0.0
    %519 = vmatpush1.msra.mxu0 0.0
    %520 = vmatprep.subr.mxu0 0.0
    %521 = vmatpush1.msra.mxu0 0.0
    %522 = vmatprep.subr.mxu0 0.0
    %523 = vmatpush1.msra.mxu0 0.0
    %524 = vmatprep.subr.mxu0 0.0
    %525 = vmatpush1.msra.mxu0 0.0
    %526 = vmatprep.subr.mxu0 0.0
    %527 = vmatpush1.msra.mxu0 0.0
    %528 = vmatprep.subr.mxu0 0.0
    %529 = vmatpush1.msra.mxu0 0.0
    %530 = vmatprep.subr.mxu0 0.0
    %531 = vmatpush1.msra.mxu0 0.0
    %532 = vmatprep.subr.mxu0 0.0
    %533 = vmatpush1.msra.mxu0 0.0
    %534 = vmatprep.subr.mxu0 0.0
    %535 = vmatpush1.msra.mxu0 0.0
    %536 = vmatprep.subr.mxu0 0.0
    %537 = vmatpush1.msra.mxu0 0.0
    %538 = vmatprep.subr.mxu0 0.0
    %539 = vmatpush1.msra.mxu0 0.0
    %540 = vmatprep.mubr.f32.mxu0 0.0
    %541 = vmatmul.mubr.f32.gmra.mrb[0].mxu0 %v429
    %v542 = vpop.f32.mrb[0].mxu0
    %v543 = vadd.f32 %v474, %v542
    %v544 = vpop.f32.mrb[0].mxu0
    %545 = vmatprep.mubr.f32.mxu0 0.0
    %546 = vmatmul.mubr.f32.gmra.mrb[0].mxu0 %v430
    %v547 = vpop.f32.mrb[0].mxu0
    %v548 = vadd.f32 %v474, %v547
    %v549 = vpop.f32.mrb[0].mxu0
    %550 = vdwg.mxu0
    %v551 = vlaneseq
    %v552 = vand.u32 %v551, 127
    %vm553 = vcmp.eq.s32.totalorder %v552, 127
    %555 = vset.pattern.permute.xlu0 0
    %556 = vperm.xlu0 %555, %v451
    %v557 = vpop.permute.xlu0 %556
    %560 = vset.pattern.permute.xlu0 0
    %561 = vperm.xlu0 %560, %v452
    %v562 = vpop.permute.xlu0 %561
    %v564 = vsel %vm553, %v557, %v543
    %v565 = vsel %vm553, %v562, %v548
    %566 = vst [vmem:[#allocation12] sm:$0xff] %v564
    %567 = vst [vmem:[#allocation12 + $0x10] sm:$0xff] %v565
    %568 = vst [vmem:[#allocation12 + $0x8] sm:$0xff] %v429
    %569 = vst [vmem:[#allocation12 + $0x18] sm:$0xff] %v430
    // Predicated region
    $region66: #{tpu_custom_call.1} parent=1 // pred_check
      _
    $region67: #{tpu_custom_call.1} parent=1 // pred_check_branch
      %571 = sbr.rel (0) target = $region69
    $region68: #{tpu_custom_call.1} parent=1 // pred_region
      %s573 = ssub.s32 512, 512
      %574 = vsyncadd [#allocation5], %s573
      %s575 = sshll.u32 [#allocation12], 4
      %s576 = int_to_ptr.vmem [resolvable:$true] %s575
      %581 = dma.vmem_to_hbm [thread:$0]  %s576, 512, %s11, [#allocation5], 256, 256, 16
    $region69: #{tpu_custom_call.1} parent=1 // pred_fallthru
      _
    // Predicated region
    $region70: #{tpu_custom_call.1} parent=1 // pred_check
      _
    $region71: #{tpu_custom_call.1} parent=1 // pred_check_branch
      %583 = sbr.rel (0) target = $region73
    $region72: #{tpu_custom_call.1} parent=1 // pred_region
      %584 = dma.done [#allocation5], 512
    $region73: #{tpu_custom_call.1} parent=1 // pred_fallthru
      _
    %585 = vsyncpa [#allocation4], 1
    %586 = vsyncpa [#allocation7], 1
    %587 = vsyncpa [#allocation10], 1
    %588 = vsyncpa [#allocation5], 1

</llo_original>
